<compile_context>
chip_gen: v6e
topology: v6e:2x2x1
jax: 0.10.0
libtpu: 0.0.40
codegen_flags: <defaults>
</compile_context>

<pallas_src>
import functools

import jax
import jax.numpy as jnp
from jax.experimental import pallas as pl
from jax.experimental.pallas import tpu as pltpu


def _round_up(n, m):
    return ((n + m - 1) // m) * m


def _pick_tile(n_pad):
    """Largest multiple-of-128 divisor of n_pad (cap 1024) giving >=2 row blocks
    (so the 'parallel' grid axis can shard across v7x's two TensorCores)."""
    for t in (1024, 512, 384, 256, 128):
        if t <= n_pad // 2 and n_pad % t == 0:
            return t
    return n_pad  # n_pad == 128 or no clean split: single block


# ---------------------------------------------------------------------------
# Kernel 1: per node row block
#   dis = deg^-1/2  (deg == 0 -> 0)      (EUP rsqrt)
#   H1  = dis ⊙ (X @ W1)                 (bf16 output, feeds the MXU later)
# ---------------------------------------------------------------------------
def _transform_kernel(x_ref, w_ref, deg_ref, h_ref, dis_ref):
    deg = deg_ref[...]                                    # (tm, 1) f32
    dis = jnp.where(deg > 0.0, jax.lax.rsqrt(deg), 0.0)   # inf -> 0
    xw = jnp.dot(x_ref[...], w_ref[...], preferred_element_type=jnp.float32)
    h_ref[...] = (xw * dis).astype(h_ref.dtype)
    dis_ref[...] = dis


def transform(x_bf16, w_bf16, deg, *, tm):
    n_pad, f_in = x_bf16.shape
    f_out = w_bf16.shape[1]
    return pl.pallas_call(
        _transform_kernel,
        out_shape=(
            jax.ShapeDtypeStruct((n_pad, f_out), jnp.bfloat16),
            jax.ShapeDtypeStruct((n_pad, 1), jnp.float32),
        ),
        grid_spec=pltpu.PrefetchScalarGridSpec(
            num_scalar_prefetch=0,
            grid=(n_pad // tm,),
            in_specs=[
                pl.BlockSpec((tm, f_in), lambda i: (i, 0)),
                pl.BlockSpec((f_in, f_out), lambda i: (0, 0)),
                pl.BlockSpec((tm, 1), lambda i: (i, 0)),
            ],
            out_specs=[
                pl.BlockSpec((tm, f_out), lambda i: (i, 0)),
                pl.BlockSpec((tm, 1), lambda i: (i, 0)),
            ],
        ),
        compiler_params=pltpu.CompilerParams(dimension_semantics=("parallel",)),
    )(x_bf16, w_bf16, deg)


# ---------------------------------------------------------------------------
# Kernel 2: layer-1 aggregation, fused with layer-1 epilogue (dis/bias/relu)
#           and layer-2 transform  ->  H2 = dis ⊙ (relu(layer1) @ W2)  in bf16
#   acc += A[i,k] @ H1[k]   (int8 A tile upcast to bf16 for the MXU; f32 acc)
# ---------------------------------------------------------------------------
def _agg1_fused_kernel(a_ref, h_ref, dis_ref, b1_ref, w2_ref, h2_ref, acc_ref):
    k = pl.program_id(1)

    @pl.when(k == 0)
    def _():
        acc_ref[...] = jnp.zeros_like(acc_ref)

    # VPU int8->bf16 cast hides under the A-tile DMA.
    acc_ref[...] += jnp.dot(a_ref[...].astype(jnp.bfloat16), h_ref[...],
                            preferred_element_type=jnp.float32)

    @pl.when(k == pl.num_programs(1) - 1)
    def _():
        dis = dis_ref[...]
        z = jnp.maximum(acc_ref[...] * dis + b1_ref[...], 0.0)   # layer1 + relu
        # F.dropout(p=0, training=False) -> identity; fused layer-2 transform:
        h2 = jnp.dot(z.astype(jnp.bfloat16), w2_ref[...],
                     preferred_element_type=jnp.float32) * dis
        h2_ref[...] = h2.astype(h2_ref.dtype)


def aggregate1_fused(a_i8, h1_bf16, dis, b1, w2_bf16, *, tm, tk):
    n_pad = a_i8.shape[0]
    hid = h1_bf16.shape[1]
    cls = w2_bf16.shape[1]
    return pl.pallas_call(
        _agg1_fused_kernel,
        out_shape=jax.ShapeDtypeStruct((n_pad, cls), jnp.bfloat16),
        grid_spec=pltpu.PrefetchScalarGridSpec(
            num_scalar_prefetch=0,
            grid=(n_pad // tm, n_pad // tk),
            in_specs=[
                pl.BlockSpec((tm, tk), lambda i, k: (i, k)),     # A tile (int8)
                pl.BlockSpec((tk, hid), lambda i, k: (k, 0)),    # H1 tile (bf16)
                pl.BlockSpec((tm, 1), lambda i, k: (i, 0)),      # dis rows (f32)
                pl.BlockSpec((1, hid), lambda i, k: (0, 0)),     # bias1 (f32)
                pl.BlockSpec((hid, cls), lambda i, k: (0, 0)),   # W2 (bf16, resident)
            ],
            out_specs=pl.BlockSpec((tm, cls), lambda i, k: (i, 0)),
            scratch_shapes=[pltpu.VMEM((tm, hid), jnp.float32)],
        ),
        compiler_params=pltpu.CompilerParams(
            dimension_semantics=("parallel", "arbitrary")),
    )(a_i8, h1_bf16, dis, b1, w2_bf16)


# ---------------------------------------------------------------------------
# Kernel 3: layer-2 aggregation with fused dis / bias / masked log_softmax
# ---------------------------------------------------------------------------
def _agg2_kernel(a_ref, h_ref, dis_ref, b2_ref, o_ref, acc_ref, *, valid_cols):
    k = pl.program_id(1)

    @pl.when(k == 0)
    def _():
        acc_ref[...] = jnp.zeros_like(acc_ref)

    acc_ref[...] += jnp.dot(a_ref[...].astype(jnp.bfloat16), h_ref[...],
                            preferred_element_type=jnp.float32)

    @pl.when(k == pl.num_programs(1) - 1)
    def _():
        z = acc_ref[...] * dis_ref[...] + b2_ref[...]
        col = jax.lax.broadcasted_iota(jnp.int32, z.shape, 1)
        z = jnp.where(col < valid_cols, z, -1e30)        # mask padded classes
        m = jnp.max(z, axis=1, keepdims=True)
        s = z - m
        lse = jnp.log(jnp.sum(jnp.exp(s), axis=1, keepdims=True))
        o_ref[...] = (s - lse).astype(o_ref.dtype)


def aggregate2(a_i8, h2_bf16, dis, b2, *, tm, tk, valid_cols):
    n_pad = a_i8.shape[0]
    cls = h2_bf16.shape[1]
    kern = functools.partial(_agg2_kernel, valid_cols=valid_cols)
    return pl.pallas_call(
        kern,
        out_shape=jax.ShapeDtypeStruct((n_pad, cls), jnp.float32),
        grid_spec=pltpu.PrefetchScalarGridSpec(
            num_scalar_prefetch=0,
            grid=(n_pad // tm, n_pad // tk),
            in_specs=[
                pl.BlockSpec((tm, tk), lambda i, k: (i, k)),     # A tile (int8)
                pl.BlockSpec((tk, cls), lambda i, k: (k, 0)),    # H2 tile (bf16)
                pl.BlockSpec((tm, 1), lambda i, k: (i, 0)),      # dis rows (f32)
                pl.BlockSpec((1, cls), lambda i, k: (0, 0)),     # bias2 (f32)
            ],
            out_specs=pl.BlockSpec((tm, cls), lambda i, k: (i, 0)),
            scratch_shapes=[pltpu.VMEM((tm, cls), jnp.float32)],
        ),
        compiler_params=pltpu.CompilerParams(
            dimension_semantics=("parallel", "arbitrary")),
    )(a_i8, h2_bf16, dis, b2)


# ---------------------------------------------------------------------------
# Full GCN forward (eval): dropout(p=0, training=False) is identity.
# ---------------------------------------------------------------------------
def gcn_forward(x, edge_index, w1, b1, w2, b2):
    n, f_in = x.shape
    hidden = w1.shape[1]
    classes = w2.shape[1]

    n_pad = _round_up(n, 128)          # padding decoupled from tile size
    tm = tk = _pick_tile(n_pad)

    f_in_p = _round_up(f_in, 128)
    hid_p = _round_up(hidden, 128)
    cls_p = _round_up(classes, 128)

    # glue: adjacency with self loops (A[target, source]) built directly in its
    # int8 storage dtype (no f32 N^2 intermediate) + in-degree vector.
    ar = jnp.arange(n, dtype=edge_index.dtype)
    src = jnp.concatenate([edge_index[0], ar])
    dst = jnp.concatenate([edge_index[1], ar])
    a = jnp.zeros((n_pad, n_pad), jnp.int8).at[dst, src].add(jnp.int8(1))
    deg = jnp.zeros((n_pad, 1), jnp.float32).at[dst, 0].add(1.0)

    # pad features / params to lane-dense (multiple-of-128) shapes, directly in
    # the dtype the kernels consume (bf16 for MXU operands, f32 for biases).
    xp = jnp.zeros((n_pad, f_in_p), jnp.bfloat16).at[:n, :f_in].set(
        x.astype(jnp.bfloat16))
    w1p = jnp.zeros((f_in_p, hid_p), jnp.bfloat16).at[:f_in, :hidden].set(
        w1.astype(jnp.bfloat16))
    b1p = jnp.zeros((1, hid_p), jnp.float32).at[:, :hidden].set(b1.reshape(1, -1))
    w2p = jnp.zeros((hid_p, cls_p), jnp.bfloat16).at[:hidden, :classes].set(
        w2.astype(jnp.bfloat16))
    b2p = jnp.zeros((1, cls_p), jnp.float32).at[:, :classes].set(b2.reshape(1, -1))

    h1, dis = transform(xp, w1p, deg, tm=tm)
    h2 = aggregate1_fused(a, h1, dis, b1p, w2p, tm=tm, tk=tk)
    out = aggregate2(a, h2, dis, b2p, tm=tm, tk=tk, valid_cols=classes)
    return out[:n, :classes]


if __name__ == "__main__":
    N, F_IN, HIDDEN, CLASSES, E = 64, 16, 32, 8, 256

    key = jax.random.PRNGKey(0)
    kx, ke, kw1, kw2 = jax.random.split(key, 4)

    x = jax.random.normal(kx, (N, F_IN), dtype=jnp.float32)
    edge_index = jax.random.randint(ke, (2, E), 0, N, dtype=jnp.int32)

    # glorot-style weights, zero bias (like PyG GCNConv)
    w1 = jax.random.normal(kw1, (F_IN, HIDDEN), dtype=jnp.float32) * (
        1.0 / jnp.sqrt(jnp.float32(F_IN)))
    b1 = jnp.zeros((1, HIDDEN), dtype=jnp.float32)
    w2 = jax.random.normal(kw2, (HIDDEN, CLASSES), dtype=jnp.float32) * (
        1.0 / jnp.sqrt(jnp.float32(HIDDEN)))
    b2 = jnp.zeros((1, CLASSES), dtype=jnp.float32)

    fwd = jax.jit(gcn_forward)
    out = fwd(x, edge_index, w1, b1, w2, b2)
    out = jax.block_until_ready(out)

    assert out.shape == (N, CLASSES)
    # rows of log_softmax must exponentiate-sum to ~1
    row_sums = jnp.exp(out).sum(axis=1)
    assert bool(jnp.allclose(row_sums, 1.0, atol=1e-4))

    print("KERNEL_OK")
</pallas_src>

<mosaic_0001>
module attributes {stable_mosaic.version = 11 : i64} {
  func.func private @main(%arg0: i32) attributes {dimension_semantics = [#tpu.dimension_semantics<core_parallel>], iteration_bounds = array<i64: 2>, tpu.core_type = #tpu.core_type<sc_scalar_subcore>, window_params = []} {
    return
  }
}

module attributes {stable_mosaic.version = 11 : i64} {
  func.func private @main(%arg0: i32) attributes {dimension_semantics = [#tpu.dimension_semantics<core_parallel>], iteration_bounds = array<i64: 2>, tpu.core_type = #tpu.core_type<sc_scalar_subcore>, window_params = []} {
    return
  }
}

module attributes {stable_mosaic.version = 11 : i64} {
  func.func @_transform_kernel(%arg0: i32, %arg1: memref<128x128xbf16, #tpu.memory_space<vmem>>, %arg2: memref<128x128xbf16, #tpu.memory_space<vmem>>, %arg3: memref<128x1xf32, #tpu.memory_space<vmem>>, %arg4: memref<128x128xbf16, #tpu.memory_space<vmem>>, %arg5: memref<128x1xf32, #tpu.memory_space<vmem>>) attributes {dimension_semantics = [#tpu.dimension_semantics<parallel>], iteration_bounds = array<i64: 1>, scalar_prefetch = 0 : i64, scratch_operands = 0 : i64, tpu.core_type = #tpu.core_type<tc>, window_params = [{transform_indices = @transform_0, window_bounds = array<i64: 128, 128>}, {pipeline_mode = #tpu.pipeline_mode<synchronous>, transform_indices = @transform_1, window_bounds = array<i64: 128, 128>}, {transform_indices = @transform_2, window_bounds = array<i64: 128, 1>}, {transform_indices = @transform_3, window_bounds = array<i64: 128, 128>}, {transform_indices = @transform_4, window_bounds = array<i64: 128, 1>}]} {
    %c0 = arith.constant 0 : index
    %c0_0 = arith.constant 0 : index
    %0 = vector.load %arg3[%c0, %c0_0] : memref<128x1xf32, #tpu.memory_space<vmem>>, vector<128x1xf32>
    %cst = arith.constant 0.000000e+00 : f32
    %1 = vector.broadcast %cst : f32 to vector<128x1xf32>
    %2 = arith.cmpf ogt, %0, %1 : vector<128x1xf32>
    %3 = math.rsqrt %0 : vector<128x1xf32>
    %cst_1 = arith.constant 0.000000e+00 : f32
    %4 = vector.broadcast %cst_1 : f32 to vector<128x1xf32>
    %5 = arith.select %2, %3, %4 : vector<128x1xi1>, vector<128x1xf32>
    %c0_2 = arith.constant 0 : index
    %c0_3 = arith.constant 0 : index
    %6 = vector.load %arg1[%c0_2, %c0_3] : memref<128x128xbf16, #tpu.memory_space<vmem>>, vector<128x128xbf16>
    %c0_4 = arith.constant 0 : index
    %c0_5 = arith.constant 0 : index
    %7 = vector.load %arg2[%c0_4, %c0_5] : memref<128x128xbf16, #tpu.memory_space<vmem>>, vector<128x128xbf16>
    %cst_6 = arith.constant dense<0.000000e+00> : vector<128x128xf32>
    %8 = tpu.matmul %6, %7, %cst_6 {dimension_numbers = #tpu.dot_dimension_numbers<[1], [0], [0], [1], [0, 0, 1, 1], [], []>} : vector<128x128xbf16>, vector<128x128xbf16>, vector<128x128xf32> -> vector<128x128xf32>
    %9 = vector.broadcast %5 : vector<128x1xf32> to vector<128x128xf32>
    %10 = arith.mulf %8, %9 : vector<128x128xf32>
    %11 = arith.truncf %10 : vector<128x128xf32> to vector<128x128xbf16>
    %c0_7 = arith.constant 0 : index
    %c0_8 = arith.constant 0 : index
    %12 = vector.load %arg4[%c0_7, %c0_8] : memref<128x128xbf16, #tpu.memory_space<vmem>>, vector<128x128xbf16>
    tpu.vector_store %arg4[%c0_7, %c0_8], %11 {strides = array<i32>} : memref<128x128xbf16, #tpu.memory_space<vmem>>, vector<128x128xbf16>,
    %c0_9 = arith.constant 0 : index
    %c0_10 = arith.constant 0 : index
    %13 = vector.load %arg5[%c0_9, %c0_10] : memref<128x1xf32, #tpu.memory_space<vmem>>, vector<128x1xf32>
    tpu.vector_store %arg5[%c0_9, %c0_10], %5 {strides = array<i32>} : memref<128x1xf32, #tpu.memory_space<vmem>>, vector<128x1xf32>,
    return
  }
  func.func @transform_0(%arg0: i32) -> (i32, i32) {
    %c0_i32 = arith.constant 0 : i32
    %c0_i32_0 = arith.constant 0 : i32
    return %arg0, %c0_i32 : i32, i32
  }
  func.func @transform_1(%arg0: i32) -> (i32, i32) {
    %c0_i32 = arith.constant 0 : i32
    %c0_i32_0 = arith.constant 0 : i32
    %c0_i32_1 = arith.constant 0 : i32
    return %c0_i32, %c0_i32_0 : i32, i32
  }
  func.func @transform_2(%arg0: i32) -> (i32, i32) {
    %c0_i32 = arith.constant 0 : i32
    %c0_i32_0 = arith.constant 0 : i32
    return %arg0, %c0_i32 : i32, i32
  }
  func.func @transform_3(%arg0: i32) -> (i32, i32) {
    %c0_i32 = arith.constant 0 : i32
    %c0_i32_0 = arith.constant 0 : i32
    return %arg0, %c0_i32 : i32, i32
  }
  func.func @transform_4(%arg0: i32) -> (i32, i32) {
    %c0_i32 = arith.constant 0 : i32
    %c0_i32_0 = arith.constant 0 : i32
    return %arg0, %c0_i32 : i32, i32
  }
}

module attributes {stable_mosaic.version = 11 : i64} {
  func.func @_agg1_fused_kernel(%arg0: i32, %arg1: i32, %arg2: memref<128x128xi8, #tpu.memory_space<vmem>>, %arg3: memref<128x128xbf16, #tpu.memory_space<vmem>>, %arg4: memref<128x1xf32, #tpu.memory_space<vmem>>, %arg5: memref<1x128xf32, #tpu.memory_space<vmem>>, %arg6: memref<128x128xbf16, #tpu.memory_space<vmem>>, %arg7: memref<128x128xbf16, #tpu.memory_space<vmem>>, %arg8: memref<128x128xf32, #tpu.memory_space<vmem>>) attributes {dimension_semantics = [#tpu.dimension_semantics<parallel>, #tpu.dimension_semantics<arbitrary>], iteration_bounds = array<i64: 1, 1>, scalar_prefetch = 0 : i64, scratch_operands = 1 : i64, tpu.core_type = #tpu.core_type<tc>, window_params = [{transform_indices = @transform_0, window_bounds = array<i64: 128, 128>}, {transform_indices = @transform_1, window_bounds = array<i64: 128, 128>}, {transform_indices = @transform_2, window_bounds = array<i64: 128, 1>}, {pipeline_mode = #tpu.pipeline_mode<synchronous>, transform_indices = @transform_3, window_bounds = array<i64: 1, 128>}, {pipeline_mode = #tpu.pipeline_mode<synchronous>, transform_indices = @transform_4, window_bounds = array<i64: 128, 128>}, {transform_indices = @transform_5, window_bounds = array<i64: 128, 128>}]} {
    %c0_i32 = arith.constant 0 : i32
    %0 = arith.cmpi eq, %arg1, %c0_i32 : i32
    %1 = arith.extui %0 : i1 to i32
    %c0_i32_0 = arith.constant 0 : i32
    %2 = arith.cmpi ne, %1, %c0_i32_0 : i32
    scf.if %2 {
      %cst_10 = arith.constant 0.000000e+00 : f32
      %13 = vector.broadcast %cst_10 : f32 to vector<128x128xf32>
      %c0_11 = arith.constant 0 : index
      %c0_12 = arith.constant 0 : index
      %14 = vector.load %arg8[%c0_11, %c0_12] : memref<128x128xf32, #tpu.memory_space<vmem>>, vector<128x128xf32>
      tpu.vector_store %arg8[%c0_11, %c0_12], %13 {strides = array<i32>} : memref<128x128xf32, #tpu.memory_space<vmem>>, vector<128x128xf32>,
    } else {
    }
    %c0 = arith.constant 0 : index
    %c0_1 = arith.constant 0 : index
    %3 = vector.load %arg8[%c0, %c0_1] : memref<128x128xf32, #tpu.memory_space<vmem>>, vector<128x128xf32>
    %c0_2 = arith.constant 0 : index
    %c0_3 = arith.constant 0 : index
    %4 = vector.load %arg2[%c0_2, %c0_3] : memref<128x128xi8, #tpu.memory_space<vmem>>, vector<128x128xi8>
    %5 = arith.sitofp %4 : vector<128x128xi8> to vector<128x128xbf16>
    %c0_4 = arith.constant 0 : index
    %c0_5 = arith.constant 0 : index
    %6 = vector.load %arg3[%c0_4, %c0_5] : memref<128x128xbf16, #tpu.memory_space<vmem>>, vector<128x128xbf16>
    %cst = arith.constant dense<0.000000e+00> : vector<128x128xf32>
    %7 = tpu.matmul %5, %6, %cst {dimension_numbers = #tpu.dot_dimension_numbers<[1], [0], [0], [1], [0, 0, 1, 1], [], []>} : vector<128x128xbf16>, vector<128x128xbf16>, vector<128x128xf32> -> vector<128x128xf32>
    %8 = arith.addf %3, %7 : vector<128x128xf32>
    %c0_6 = arith.constant 0 : index
    %c0_7 = arith.constant 0 : index
    %9 = vector.load %arg8[%c0_6, %c0_7] : memref<128x128xf32, #tpu.memory_space<vmem>>, vector<128x128xf32>
    tpu.vector_store %arg8[%c0_6, %c0_7], %8 {strides = array<i32>} : memref<128x128xf32, #tpu.memory_space<vmem>>, vector<128x128xf32>,
    %c0_i32_8 = arith.constant 0 : i32
    %10 = arith.cmpi eq, %arg1, %c0_i32_8 : i32
    %11 = arith.extui %10 : i1 to i32
    %c0_i32_9 = arith.constant 0 : i32
    %12 = arith.cmpi ne, %11, %c0_i32_9 : i32
    scf.if %12 {
      %c0_10 = arith.constant 0 : index
      %c0_11 = arith.constant 0 : index
      %13 = vector.load %arg4[%c0_10, %c0_11] : memref<128x1xf32, #tpu.memory_space<vmem>>, vector<128x1xf32>
      %c0_12 = arith.constant 0 : index
      %c0_13 = arith.constant 0 : index
      %14 = vector.load %arg8[%c0_12, %c0_13] : memref<128x128xf32, #tpu.memory_space<vmem>>, vector<128x128xf32>
      %15 = vector.broadcast %13 : vector<128x1xf32> to vector<128x128xf32>
      %16 = arith.mulf %14, %15 : vector<128x128xf32>
      %c0_14 = arith.constant 0 : index
      %c0_15 = arith.constant 0 : index
      %17 = vector.load %arg5[%c0_14, %c0_15] : memref<1x128xf32, #tpu.memory_space<vmem>>, vector<1x128xf32>
      %18 = vector.broadcast %17 : vector<1x128xf32> to vector<128x128xf32>
      %19 = arith.addf %16, %18 : vector<128x128xf32>
      %cst_16 = arith.constant 0.000000e+00 : f32
      %20 = vector.broadcast %cst_16 : f32 to vector<128x128xf32>
      %21 = arith.maximumf %19, %20 : vector<128x128xf32>
      %22 = arith.truncf %21 : vector<128x128xf32> to vector<128x128xbf16>
      %c0_17 = arith.constant 0 : index
      %c0_18 = arith.constant 0 : index
      %23 = vector.load %arg6[%c0_17, %c0_18] : memref<128x128xbf16, #tpu.memory_space<vmem>>, vector<128x128xbf16>
      %cst_19 = arith.constant dense<0.000000e+00> : vector<128x128xf32>
      %24 = tpu.matmul %22, %23, %cst_19 {dimension_numbers = #tpu.dot_dimension_numbers<[1], [0], [0], [1], [0, 0, 1, 1], [], []>} : vector<128x128xbf16>, vector<128x128xbf16>, vector<128x128xf32> -> vector<128x128xf32>
      %25 = vector.broadcast %13 : vector<128x1xf32> to vector<128x128xf32>
      %26 = arith.mulf %24, %25 : vector<128x128xf32>
      %27 = arith.truncf %26 : vector<128x128xf32> to vector<128x128xbf16>
      %c0_20 = arith.constant 0 : index
      %c0_21 = arith.constant 0 : index
      %28 = vector.load %arg7[%c0_20, %c0_21] : memref<128x128xbf16, #tpu.memory_space<vmem>>, vector<128x128xbf16>
      tpu.vector_store %arg7[%c0_20, %c0_21], %27 {strides = array<i32>} : memref<128x128xbf16, #tpu.memory_space<vmem>>, vector<128x128xbf16>,
    } else {
    }
    return
  }
  func.func @transform_0(%arg0: i32, %arg1: i32) -> (i32, i32) {
    %c0_i32 = arith.constant 0 : i32
    return %arg0, %arg1 : i32, i32
  }
  func.func @transform_1(%arg0: i32, %arg1: i32) -> (i32, i32) {
    %c0_i32 = arith.constant 0 : i32
    %c0_i32_0 = arith.constant 0 : i32
    return %arg1, %c0_i32 : i32, i32
  }
  func.func @transform_2(%arg0: i32, %arg1: i32) -> (i32, i32) {
    %c0_i32 = arith.constant 0 : i32
    %c0_i32_0 = arith.constant 0 : i32
    return %arg0, %c0_i32 : i32, i32
  }
  func.func @transform_3(%arg0: i32, %arg1: i32) -> (i32, i32) {
    %c0_i32 = arith.constant 0 : i32
    %c0_i32_0 = arith.constant 0 : i32
    %c0_i32_1 = arith.constant 0 : i32
    return %c0_i32, %c0_i32_0 : i32, i32
  }
  func.func @transform_4(%arg0: i32, %arg1: i32) -> (i32, i32) {
    %c0_i32 = arith.constant 0 : i32
    %c0_i32_0 = arith.constant 0 : i32
    %c0_i32_1 = arith.constant 0 : i32
    return %c0_i32, %c0_i32_0 : i32, i32
  }
  func.func @transform_5(%arg0: i32, %arg1: i32) -> (i32, i32) {
    %c0_i32 = arith.constant 0 : i32
    %c0_i32_0 = arith.constant 0 : i32
    return %arg0, %c0_i32 : i32, i32
  }
}

module attributes {stable_mosaic.version = 11 : i64} {
  func.func @_agg2_kernel(%arg0: i32, %arg1: i32, %arg2: memref<128x128xi8, #tpu.memory_space<vmem>>, %arg3: memref<128x128xbf16, #tpu.memory_space<vmem>>, %arg4: memref<128x1xf32, #tpu.memory_space<vmem>>, %arg5: memref<1x128xf32, #tpu.memory_space<vmem>>, %arg6: memref<128x128xf32, #tpu.memory_space<vmem>>, %arg7: memref<128x128xf32, #tpu.memory_space<vmem>>) attributes {dimension_semantics = [#tpu.dimension_semantics<parallel>, #tpu.dimension_semantics<arbitrary>], iteration_bounds = array<i64: 1, 1>, scalar_prefetch = 0 : i64, scratch_operands = 1 : i64, tpu.core_type = #tpu.core_type<tc>, window_params = [{transform_indices = @transform_0, window_bounds = array<i64: 128, 128>}, {transform_indices = @transform_1, window_bounds = array<i64: 128, 128>}, {transform_indices = @transform_2, window_bounds = array<i64: 128, 1>}, {pipeline_mode = #tpu.pipeline_mode<synchronous>, transform_indices = @transform_3, window_bounds = array<i64: 1, 128>}, {transform_indices = @transform_4, window_bounds = array<i64: 128, 128>}]} {
    %c0_i32 = arith.constant 0 : i32
    %0 = arith.cmpi eq, %arg1, %c0_i32 : i32
    %1 = arith.extui %0 : i1 to i32
    %c0_i32_0 = arith.constant 0 : i32
    %2 = arith.cmpi ne, %1, %c0_i32_0 : i32
    scf.if %2 {
      %cst_10 = arith.constant 0.000000e+00 : f32
      %13 = vector.broadcast %cst_10 : f32 to vector<128x128xf32>
      %c0_11 = arith.constant 0 : index
      %c0_12 = arith.constant 0 : index
      %14 = vector.load %arg7[%c0_11, %c0_12] : memref<128x128xf32, #tpu.memory_space<vmem>>, vector<128x128xf32>
      tpu.vector_store %arg7[%c0_11, %c0_12], %13 {strides = array<i32>} : memref<128x128xf32, #tpu.memory_space<vmem>>, vector<128x128xf32>,
    } else {
    }
    %c0 = arith.constant 0 : index
    %c0_1 = arith.constant 0 : index
    %3 = vector.load %arg7[%c0, %c0_1] : memref<128x128xf32, #tpu.memory_space<vmem>>, vector<128x128xf32>
    %c0_2 = arith.constant 0 : index
    %c0_3 = arith.constant 0 : index
    %4 = vector.load %arg2[%c0_2, %c0_3] : memref<128x128xi8, #tpu.memory_space<vmem>>, vector<128x128xi8>
    %5 = arith.sitofp %4 : vector<128x128xi8> to vector<128x128xbf16>
    %c0_4 = arith.constant 0 : index
    %c0_5 = arith.constant 0 : index
    %6 = vector.load %arg3[%c0_4, %c0_5] : memref<128x128xbf16, #tpu.memory_space<vmem>>, vector<128x128xbf16>
    %cst = arith.constant dense<0.000000e+00> : vector<128x128xf32>
    %7 = tpu.matmul %5, %6, %cst {dimension_numbers = #tpu.dot_dimension_numbers<[1], [0], [0], [1], [0, 0, 1, 1], [], []>} : vector<128x128xbf16>, vector<128x128xbf16>, vector<128x128xf32> -> vector<128x128xf32>
    %8 = arith.addf %3, %7 : vector<128x128xf32>
    %c0_6 = arith.constant 0 : index
    %c0_7 = arith.constant 0 : index
    %9 = vector.load %arg7[%c0_6, %c0_7] : memref<128x128xf32, #tpu.memory_space<vmem>>, vector<128x128xf32>
    tpu.vector_store %arg7[%c0_6, %c0_7], %8 {strides = array<i32>} : memref<128x128xf32, #tpu.memory_space<vmem>>, vector<128x128xf32>,
    %c0_i32_8 = arith.constant 0 : i32
    %10 = arith.cmpi eq, %arg1, %c0_i32_8 : i32
    %11 = arith.extui %10 : i1 to i32
    %c0_i32_9 = arith.constant 0 : i32
    %12 = arith.cmpi ne, %11, %c0_i32_9 : i32
    scf.if %12 {
      %c0_10 = arith.constant 0 : index
      %c0_11 = arith.constant 0 : index
      %13 = vector.load %arg7[%c0_10, %c0_11] : memref<128x128xf32, #tpu.memory_space<vmem>>, vector<128x128xf32>
      %c0_12 = arith.constant 0 : index
      %c0_13 = arith.constant 0 : index
      %14 = vector.load %arg4[%c0_12, %c0_13] : memref<128x1xf32, #tpu.memory_space<vmem>>, vector<128x1xf32>
      %15 = vector.broadcast %14 : vector<128x1xf32> to vector<128x128xf32>
      %16 = arith.mulf %13, %15 : vector<128x128xf32>
      %c0_14 = arith.constant 0 : index
      %c0_15 = arith.constant 0 : index
      %17 = vector.load %arg5[%c0_14, %c0_15] : memref<1x128xf32, #tpu.memory_space<vmem>>, vector<1x128xf32>
      %18 = vector.broadcast %17 : vector<1x128xf32> to vector<128x128xf32>
      %19 = arith.addf %16, %18 : vector<128x128xf32>
      %20 = tpu.iota {dimensions = array<i32: 1>} : vector<128x128xi32>
      %c8_i32 = arith.constant 8 : i32
      %21 = vector.broadcast %c8_i32 : i32 to vector<128x128xi32>
      %22 = arith.cmpi slt, %20, %21 : vector<128x128xi32>
      %cst_16 = arith.constant -1.000000e+30 : f32
      %23 = vector.broadcast %cst_16 : f32 to vector<128x128xf32>
      %24 = arith.select %22, %19, %23 : vector<128x128xi1>, vector<128x128xf32>
      %cst_17 = arith.constant dense<0xFF800000> : vector<128xf32>
      %25 = vector.multi_reduction <maximumf>, %24, %cst_17 [1] : vector<128x128xf32> to vector<128xf32>
      %26 = vector.shape_cast %25 : vector<128xf32> to vector<128x1xf32>
      %27 = vector.broadcast %26 : vector<128x1xf32> to vector<128x128xf32>
      %28 = arith.subf %24, %27 : vector<128x128xf32>
      %29 = math.exp %28 : vector<128x128xf32>
      %cst_18 = arith.constant dense<0.000000e+00> : vector<128xf32>
      %30 = vector.multi_reduction <add>, %29, %cst_18 [1] : vector<128x128xf32> to vector<128xf32>
      %31 = vector.shape_cast %30 : vector<128xf32> to vector<128x1xf32>
      %32 = math.log %31 : vector<128x1xf32>
      %33 = vector.broadcast %32 : vector<128x1xf32> to vector<128x128xf32>
      %34 = arith.subf %28, %33 : vector<128x128xf32>
      %c0_19 = arith.constant 0 : index
      %c0_20 = arith.constant 0 : index
      %35 = vector.load %arg6[%c0_19, %c0_20] : memref<128x128xf32, #tpu.memory_space<vmem>>, vector<128x128xf32>
      tpu.vector_store %arg6[%c0_19, %c0_20], %34 {strides = array<i32>} : memref<128x128xf32, #tpu.memory_space<vmem>>, vector<128x128xf32>,
    } else {
    }
    return
  }
  func.func @transform_0(%arg0: i32, %arg1: i32) -> (i32, i32) {
    %c0_i32 = arith.constant 0 : i32
    return %arg0, %arg1 : i32, i32
  }
  func.func @transform_1(%arg0: i32, %arg1: i32) -> (i32, i32) {
    %c0_i32 = arith.constant 0 : i32
    %c0_i32_0 = arith.constant 0 : i32
    return %arg1, %c0_i32 : i32, i32
  }
  func.func @transform_2(%arg0: i32, %arg1: i32) -> (i32, i32) {
    %c0_i32 = arith.constant 0 : i32
    %c0_i32_0 = arith.constant 0 : i32
    return %arg0, %c0_i32 : i32, i32
  }
  func.func @transform_3(%arg0: i32, %arg1: i32) -> (i32, i32) {
    %c0_i32 = arith.constant 0 : i32
    %c0_i32_0 = arith.constant 0 : i32
    %c0_i32_1 = arith.constant 0 : i32
    return %c0_i32, %c0_i32_0 : i32, i32
  }
  func.func @transform_4(%arg0: i32, %arg1: i32) -> (i32, i32) {
    %c0_i32 = arith.constant 0 : i32
    %c0_i32_0 = arith.constant 0 : i32
    return %arg0, %c0_i32 : i32, i32
  }
}

</mosaic_0001>

<llo_original>
// kernel: gcn_forward.3
$region0: #{gcn_forward.3}
  #allocation0 [shape = 'u32[]', space=smem, size = 0x4, offset = 0x4, fixed_abs, tag = 'smem constant byte address 0x4 - core index']
  #allocation1 [shape = 'u32[144,128]{1,0:T(1,128)}', space=vmem, size = 0x12000, scoped, tag = 'internal scratch']
  %s0 = inlined_call_operand.vmem [shape: bf16[128,128], index: 0, kind: input, shape index: {}]
  %s1 = inlined_call_operand.vmem [shape: bf16[128,128], index: 1, kind: input, shape index: {}]
  %s2 = inlined_call_operand.vmem [shape: f32[128,1], index: 2, kind: input, shape index: {}]
  %s3 = inlined_call_operand.vmem [shape: bf16[128,128], index: 3, kind: output, shape index: {0}]
  %s4 = inlined_call_operand.vmem [shape: f32[128,1], index: 4, kind: output, shape index: {1}]
  %5 = xla_tuple %s3, %s4
  %s6 = sld [smem:[#allocation0]]
  $region30: #{gcn_forward.3} parent=0
    _
  %s8 = ssub.s32 1, %s6
  %s9 = scalar_select 0, %s8, %s6
  // Predicated region
  $region2: #{gcn_forward.3} parent=0 // pred_check
    _
  $region3: #{gcn_forward.3} parent=0 // pred_check_branch
    %11 = sbr.rel (0) target = $region5
  $region4: #{gcn_forward.3} parent=0 // pred_region
    _
  $region5: #{gcn_forward.3} parent=0 // pred_fallthru
    _
  // Predicated region
  $region6: #{gcn_forward.3} parent=0 // pred_check
    _
  $region7: #{gcn_forward.3} parent=0 // pred_check_branch
    %13 = sbr.rel (0) target = $region9
  $region8: #{gcn_forward.3} parent=0 // pred_region
    _
  $region9: #{gcn_forward.3} parent=0 // pred_fallthru
    _
  // Predicated region
  $region10: #{gcn_forward.3} parent=0 // pred_check
    _
  $region11: #{gcn_forward.3} parent=0 // pred_check_branch
    %15 = sbr.rel (0) target = $region13
  $region12: #{gcn_forward.3} parent=0 // pred_region
    _
  $region13: #{gcn_forward.3} parent=0 // pred_fallthru
    _
  %v17 = vld [vmem:[%s2] sm:$0xff]
  %v18 = vld [vmem:[%s2 + $0x8] sm:$0xff]
  %v19 = vld [vmem:[%s2 + $0x10] sm:$0xff]
  %v20 = vld [vmem:[%s2 + $0x18] sm:$0xff]
  %v21 = vld [vmem:[%s2 + $0x20] sm:$0xff]
  %v22 = vld [vmem:[%s2 + $0x28] sm:$0xff]
  %v23 = vld [vmem:[%s2 + $0x30] sm:$0xff]
  %v24 = vld [vmem:[%s2 + $0x38] sm:$0xff]
  %v25 = vld [vmem:[%s2 + $0x40] sm:$0xff]
  %v26 = vld [vmem:[%s2 + $0x48] sm:$0xff]
  %v27 = vld [vmem:[%s2 + $0x50] sm:$0xff]
  %v28 = vld [vmem:[%s2 + $0x58] sm:$0xff]
  %v29 = vld [vmem:[%s2 + $0x60] sm:$0xff]
  %v30 = vld [vmem:[%s2 + $0x68] sm:$0xff]
  %v31 = vld [vmem:[%s2 + $0x70] sm:$0xff]
  %v32 = vld [vmem:[%s2 + $0x78] sm:$0xff]
  %vm33 = vcmp.gt.f32.partialorder %v17, 0.0
  %vm34 = vcmp.gt.f32.partialorder %v18, 0.0
  %vm35 = vcmp.gt.f32.partialorder %v19, 0.0
  %vm36 = vcmp.gt.f32.partialorder %v20, 0.0
  %vm37 = vcmp.gt.f32.partialorder %v21, 0.0
  %vm38 = vcmp.gt.f32.partialorder %v22, 0.0
  %vm39 = vcmp.gt.f32.partialorder %v23, 0.0
  %vm40 = vcmp.gt.f32.partialorder %v24, 0.0
  %vm41 = vcmp.gt.f32.partialorder %v25, 0.0
  %vm42 = vcmp.gt.f32.partialorder %v26, 0.0
  %vm43 = vcmp.gt.f32.partialorder %v27, 0.0
  %vm44 = vcmp.gt.f32.partialorder %v28, 0.0
  %vm45 = vcmp.gt.f32.partialorder %v29, 0.0
  %vm46 = vcmp.gt.f32.partialorder %v30, 0.0
  %vm47 = vcmp.gt.f32.partialorder %v31, 0.0
  %vm48 = vcmp.gt.f32.partialorder %v32, 0.0
  %v49 = vrsqrt.pop %v17
  %v50 = vrsqrt.pop %v18
  %v51 = vrsqrt.pop %v19
  %v52 = vrsqrt.pop %v20
  %v53 = vrsqrt.pop %v21
  %v54 = vrsqrt.pop %v22
  %v55 = vrsqrt.pop %v23
  %v56 = vrsqrt.pop %v24
  %v57 = vrsqrt.pop %v25
  %v58 = vrsqrt.pop %v26
  %v59 = vrsqrt.pop %v27
  %v60 = vrsqrt.pop %v28
  %v61 = vrsqrt.pop %v29
  %v62 = vrsqrt.pop %v30
  %v63 = vrsqrt.pop %v31
  %v64 = vrsqrt.pop %v32
  %v65 = vsel %vm33, %v49, 0.0
  %v66 = vsel %vm34, %v50, 0.0
  %v67 = vsel %vm35, %v51, 0.0
  %v68 = vsel %vm36, %v52, 0.0
  %v69 = vsel %vm37, %v53, 0.0
  %v70 = vsel %vm38, %v54, 0.0
  %v71 = vsel %vm39, %v55, 0.0
  %v72 = vsel %vm40, %v56, 0.0
  %v73 = vsel %vm41, %v57, 0.0
  %v74 = vsel %vm42, %v58, 0.0
  %v75 = vsel %vm43, %v59, 0.0
  %v76 = vsel %vm44, %v60, 0.0
  %v77 = vsel %vm45, %v61, 0.0
  %v78 = vsel %vm46, %v62, 0.0
  %v79 = vsel %vm47, %v63, 0.0
  %v80 = vsel %vm48, %v64, 0.0
  %v81 = vld [vmem:[%s0] sm:$0xf]
  %v82 = vld [vmem:[%s0 + $0x4] sm:$0xf]
  %v83 = vld [vmem:[%s0 + $0x8] sm:$0xf]
  %v84 = vld [vmem:[%s0 + $0xc] sm:$0xf]
  %v85 = vld [vmem:[%s0 + $0x10] sm:$0xf]
  %v86 = vld [vmem:[%s0 + $0x14] sm:$0xf]
  %v87 = vld [vmem:[%s0 + $0x18] sm:$0xf]
  %v88 = vld [vmem:[%s0 + $0x1c] sm:$0xf]
  %v89 = vld [vmem:[%s0 + $0x20] sm:$0xf]
  %v90 = vld [vmem:[%s0 + $0x24] sm:$0xf]
  %v91 = vld [vmem:[%s0 + $0x28] sm:$0xf]
  %v92 = vld [vmem:[%s0 + $0x2c] sm:$0xf]
  %v93 = vld [vmem:[%s0 + $0x30] sm:$0xf]
  %v94 = vld [vmem:[%s0 + $0x34] sm:$0xf]
  %v95 = vld [vmem:[%s0 + $0x38] sm:$0xf]
  %v96 = vld [vmem:[%s0 + $0x3c] sm:$0xf]
  %v97 = vld [vmem:[%s1] sm:$0xf]
  %v98 = vld [vmem:[%s1 + $0x4] sm:$0xf]
  %v99 = vld [vmem:[%s1 + $0x8] sm:$0xf]
  %v100 = vld [vmem:[%s1 + $0xc] sm:$0xf]
  %v101 = vld [vmem:[%s1 + $0x10] sm:$0xf]
  %v102 = vld [vmem:[%s1 + $0x14] sm:$0xf]
  %v103 = vld [vmem:[%s1 + $0x18] sm:$0xf]
  %v104 = vld [vmem:[%s1 + $0x1c] sm:$0xf]
  %v105 = vld [vmem:[%s1 + $0x20] sm:$0xf]
  %v106 = vld [vmem:[%s1 + $0x24] sm:$0xf]
  %v107 = vld [vmem:[%s1 + $0x28] sm:$0xf]
  %v108 = vld [vmem:[%s1 + $0x2c] sm:$0xf]
  %v109 = vld [vmem:[%s1 + $0x30] sm:$0xf]
  %v110 = vld [vmem:[%s1 + $0x34] sm:$0xf]
  %v111 = vld [vmem:[%s1 + $0x38] sm:$0xf]
  %v112 = vld [vmem:[%s1 + $0x3c] sm:$0xf]
  %v129 = vunpack.c.l.b16 %v81
  %v130 = vunpack.c.l.b16 %v82
  %v131 = vunpack.c.l.b16 %v83
  %v132 = vunpack.c.l.b16 %v84
  %v133 = vunpack.c.l.b16 %v85
  %v134 = vunpack.c.l.b16 %v86
  %v135 = vunpack.c.l.b16 %v87
  %v136 = vunpack.c.l.b16 %v88
  %v137 = vunpack.c.l.b16 %v89
  %v138 = vunpack.c.l.b16 %v90
  %v139 = vunpack.c.l.b16 %v91
  %v140 = vunpack.c.l.b16 %v92
  %v141 = vunpack.c.l.b16 %v93
  %v142 = vunpack.c.l.b16 %v94
  %v143 = vunpack.c.l.b16 %v95
  %v144 = vunpack.c.l.b16 %v96
  %v145 = vpack.c.b16 %v130, %v129
  %v146 = vpack.c.b16 %v132, %v131
  %v147 = vpack.c.b16 %v134, %v133
  %v148 = vpack.c.b16 %v136, %v135
  %v149 = vpack.c.b16 %v138, %v137
  %v150 = vpack.c.b16 %v140, %v139
  %v151 = vpack.c.b16 %v142, %v141
  %v152 = vpack.c.b16 %v144, %v143
  %v177 = vunpack.c.l.b16 %v97
  %v178 = vunpack.c.l.b16 %v98
  %v179 = vunpack.c.l.b16 %v99
  %v180 = vunpack.c.l.b16 %v100
  %v181 = vunpack.c.l.b16 %v101
  %v182 = vunpack.c.l.b16 %v102
  %v183 = vunpack.c.l.b16 %v103
  %v184 = vunpack.c.l.b16 %v104
  %v185 = vunpack.c.l.b16 %v105
  %v186 = vunpack.c.l.b16 %v106
  %v187 = vunpack.c.l.b16 %v107
  %v188 = vunpack.c.l.b16 %v108
  %v189 = vunpack.c.l.b16 %v109
  %v190 = vunpack.c.l.b16 %v110
  %v191 = vunpack.c.l.b16 %v111
  %v192 = vunpack.c.l.b16 %v112
  %v193 = vpack.c.b16 %v178, %v177
  %v194 = vpack.c.b16 %v180, %v179
  %v195 = vpack.c.b16 %v182, %v181
  %v196 = vpack.c.b16 %v184, %v183
  %v197 = vpack.c.b16 %v186, %v185
  %v198 = vpack.c.b16 %v188, %v187
  %v199 = vpack.c.b16 %v190, %v189
  %v200 = vpack.c.b16 %v192, %v191
  %209 = vmatprep.subr.bf16.mxu0 0
  %210 = vmatpush1.bf16.msra.mxu0 %v200
  %211 = vmatprep.subr.bf16.mxu0 0
  %212 = vmatpush1.bf16.msra.mxu0 %v199
  %213 = vmatprep.subr.bf16.mxu0 0
  %214 = vmatpush1.bf16.msra.mxu0 %v198
  %215 = vmatprep.subr.bf16.mxu0 0
  %216 = vmatpush1.bf16.msra.mxu0 %v197
  %217 = vmatprep.subr.bf16.mxu0 0
  %218 = vmatpush1.bf16.msra.mxu0 %v196
  %219 = vmatprep.subr.bf16.mxu0 0
  %220 = vmatpush1.bf16.msra.mxu0 %v195
  %221 = vmatprep.subr.bf16.mxu0 0
  %222 = vmatpush1.bf16.msra.mxu0 %v194
  %223 = vmatprep.subr.bf16.mxu0 0
  %224 = vmatpush1.bf16.msra.mxu0 %v193
  %225 = vmatprep.subr.bf16.mxu0 0
  %226 = vmatpush2.bf16.msra.mxu0 0
  %227 = vmatprep.subr.bf16.mxu0 0
  %228 = vmatpush2.bf16.msra.mxu0 0
  %229 = vmatprep.subr.bf16.mxu0 0
  %230 = vmatpush2.bf16.msra.mxu0 0
  %231 = vmatprep.subr.bf16.mxu0 0
  %232 = vmatpush2.bf16.msra.mxu0 0
  %233 = vmatprep.subr.bf16.mxu0 0
  %234 = vmatpush2.bf16.msra.mxu0 0
  %235 = vmatprep.subr.bf16.mxu0 0
  %236 = vmatpush2.bf16.msra.mxu0 0
  %237 = vmatprep.subr.bf16.mxu0 0
  %238 = vmatpush2.bf16.msra.mxu0 0
  %239 = vmatprep.subr.bf16.mxu0 0
  %240 = vmatpush2.bf16.msra.mxu0 0
  %241 = vmatprep.mubr.bf16.mxu0 0
  %242 = vmatmul.mubr.bf16.gmra.mxu0 %v145
  %v243 = vpop.f32.mrf.mxu0
  %v244 = vadd.f32 0.0, %v243
  %v245 = vpop.f32.mrf.mxu0
  %v246 = vpop.f32.mrf.mxu0
  %v247 = vadd.f32 0.0, %v246
  %v248 = vpop.f32.mrf.mxu0
  %249 = vmatprep.mubr.bf16.mxu0 0
  %250 = vmatmul.mubr.bf16.gmra.mxu0 %v146
  %v251 = vpop.f32.mrf.mxu0
  %v252 = vadd.f32 0.0, %v251
  %v253 = vpop.f32.mrf.mxu0
  %v254 = vpop.f32.mrf.mxu0
  %v255 = vadd.f32 0.0, %v254
  %v256 = vpop.f32.mrf.mxu0
  %257 = vmatprep.mubr.bf16.mxu0 0
  %258 = vmatmul.mubr.bf16.gmra.mxu0 %v147
  %v259 = vpop.f32.mrf.mxu0
  %v260 = vadd.f32 0.0, %v259
  %v261 = vpop.f32.mrf.mxu0
  %v262 = vpop.f32.mrf.mxu0
  %v263 = vadd.f32 0.0, %v262
  %v264 = vpop.f32.mrf.mxu0
  %265 = vmatprep.mubr.bf16.mxu0 0
  %266 = vmatmul.mubr.bf16.gmra.mxu0 %v148
  %v267 = vpop.f32.mrf.mxu0
  %v268 = vadd.f32 0.0, %v267
  %v269 = vpop.f32.mrf.mxu0
  %v270 = vpop.f32.mrf.mxu0
  %v271 = vadd.f32 0.0, %v270
  %v272 = vpop.f32.mrf.mxu0
  %273 = vmatprep.mubr.bf16.mxu0 0
  %274 = vmatmul.mubr.bf16.gmra.mxu0 %v149
  %v275 = vpop.f32.mrf.mxu0
  %v276 = vadd.f32 0.0, %v275
  %v277 = vpop.f32.mrf.mxu0
  %v278 = vpop.f32.mrf.mxu0
  %v279 = vadd.f32 0.0, %v278
  %v280 = vpop.f32.mrf.mxu0
  %281 = vmatprep.mubr.bf16.mxu0 0
  %282 = vmatmul.mubr.bf16.gmra.mxu0 %v150
  %v283 = vpop.f32.mrf.mxu0
  %v284 = vadd.f32 0.0, %v283
  %v285 = vpop.f32.mrf.mxu0
  %v286 = vpop.f32.mrf.mxu0
  %v287 = vadd.f32 0.0, %v286
  %v288 = vpop.f32.mrf.mxu0
  %289 = vmatprep.mubr.bf16.mxu0 0
  %290 = vmatmul.mubr.bf16.gmra.mxu0 %v151
  %v291 = vpop.f32.mrf.mxu0
  %v292 = vadd.f32 0.0, %v291
  %v293 = vpop.f32.mrf.mxu0
  %v294 = vpop.f32.mrf.mxu0
  %v295 = vadd.f32 0.0, %v294
  %v296 = vpop.f32.mrf.mxu0
  %297 = vmatprep.mubr.bf16.mxu0 0
  %298 = vmatmul.mubr.bf16.gmra.mxu0 %v152
  %v299 = vpop.f32.mrf.mxu0
  %v300 = vadd.f32 0.0, %v299
  %v301 = vpop.f32.mrf.mxu0
  %v302 = vpop.f32.mrf.mxu0
  %v303 = vadd.f32 0.0, %v302
  %v304 = vpop.f32.mrf.mxu0
  %305 = vdwg.mxu0
  %307 = vset.pattern.permute.xlu0 0
  %308 = vperm.xlu0 %307, %v65
  %v309 = vpop.permute.xlu0 %308
  %312 = vset.pattern.permute.xlu0 0
  %313 = vperm.xlu0 %312, %v66
  %v314 = vpop.permute.xlu0 %313
  %317 = vset.pattern.permute.xlu0 0
  %318 = vperm.xlu0 %317, %v67
  %v319 = vpop.permute.xlu0 %318
  %322 = vset.pattern.permute.xlu0 0
  %323 = vperm.xlu0 %322, %v68
  %v324 = vpop.permute.xlu0 %323
  %327 = vset.pattern.permute.xlu0 0
  %328 = vperm.xlu0 %327, %v69
  %v329 = vpop.permute.xlu0 %328
  %332 = vset.pattern.permute.xlu0 0
  %333 = vperm.xlu0 %332, %v70
  %v334 = vpop.permute.xlu0 %333
  %337 = vset.pattern.permute.xlu0 0
  %338 = vperm.xlu0 %337, %v71
  %v339 = vpop.permute.xlu0 %338
  %342 = vset.pattern.permute.xlu0 0
  %343 = vperm.xlu0 %342, %v72
  %v344 = vpop.permute.xlu0 %343
  %347 = vset.pattern.permute.xlu0 0
  %348 = vperm.xlu0 %347, %v73
  %v349 = vpop.permute.xlu0 %348
  %352 = vset.pattern.permute.xlu0 0
  %353 = vperm.xlu0 %352, %v74
  %v354 = vpop.permute.xlu0 %353
  %357 = vset.pattern.permute.xlu0 0
  %358 = vperm.xlu0 %357, %v75
  %v359 = vpop.permute.xlu0 %358
  %362 = vset.pattern.permute.xlu0 0
  %363 = vperm.xlu0 %362, %v76
  %v364 = vpop.permute.xlu0 %363
  %367 = vset.pattern.permute.xlu0 0
  %368 = vperm.xlu0 %367, %v77
  %v369 = vpop.permute.xlu0 %368
  %372 = vset.pattern.permute.xlu0 0
  %373 = vperm.xlu0 %372, %v78
  %v374 = vpop.permute.xlu0 %373
  %377 = vset.pattern.permute.xlu0 0
  %378 = vperm.xlu0 %377, %v79
  %v379 = vpop.permute.xlu0 %378
  %382 = vset.pattern.permute.xlu0 0
  %383 = vperm.xlu0 %382, %v80
  %v384 = vpop.permute.xlu0 %383
  %v386 = vmul.f32 %v244, %v309
  %v387 = vmul.f32 %v247, %v314
  %v388 = vmul.f32 %v252, %v319
  %v389 = vmul.f32 %v255, %v324
  %v390 = vmul.f32 %v260, %v329
  %v391 = vmul.f32 %v263, %v334
  %v392 = vmul.f32 %v268, %v339
  %v393 = vmul.f32 %v271, %v344
  %v394 = vmul.f32 %v276, %v349
  %v395 = vmul.f32 %v279, %v354
  %v396 = vmul.f32 %v284, %v359
  %v397 = vmul.f32 %v287, %v364
  %v398 = vmul.f32 %v292, %v369
  %v399 = vmul.f32 %v295, %v374
  %v400 = vmul.f32 %v300, %v379
  %v401 = vmul.f32 %v303, %v384
  %v402 = vpack.c.bf16 %v387, %v386
  %v403 = vpack.c.bf16 %v389, %v388
  %v404 = vpack.c.bf16 %v391, %v390
  %v405 = vpack.c.bf16 %v393, %v392
  %v406 = vpack.c.bf16 %v395, %v394
  %v407 = vpack.c.bf16 %v397, %v396
  %v408 = vpack.c.bf16 %v399, %v398
  %v409 = vpack.c.bf16 %v401, %v400
  %v418 = vunpack.c.l.b16 %v402
  %v419 = vunpack.c.h.b16 %v402
  %v420 = vunpack.c.l.b16 %v403
  %v421 = vunpack.c.h.b16 %v403
  %v422 = vunpack.c.l.b16 %v404
  %v423 = vunpack.c.h.b16 %v404
  %v424 = vunpack.c.l.b16 %v405
  %v425 = vunpack.c.h.b16 %v405
  %v426 = vunpack.c.l.b16 %v406
  %v427 = vunpack.c.h.b16 %v406
  %v428 = vunpack.c.l.b16 %v407
  %v429 = vunpack.c.h.b16 %v407
  %v430 = vunpack.c.l.b16 %v408
  %v431 = vunpack.c.h.b16 %v408
  %v432 = vunpack.c.l.b16 %v409
  %v433 = vunpack.c.h.b16 %v409
  %v434 = vpack.c.b16 %v418, %v418
  %v435 = vpack.c.b16 %v419, %v419
  %v436 = vpack.c.b16 %v420, %v420
  %v437 = vpack.c.b16 %v421, %v421
  %v438 = vpack.c.b16 %v422, %v422
  %v439 = vpack.c.b16 %v423, %v423
  %v440 = vpack.c.b16 %v424, %v424
  %v441 = vpack.c.b16 %v425, %v425
  %v442 = vpack.c.b16 %v426, %v426
  %v443 = vpack.c.b16 %v427, %v427
  %v444 = vpack.c.b16 %v428, %v428
  %v445 = vpack.c.b16 %v429, %v429
  %v446 = vpack.c.b16 %v430, %v430
  %v447 = vpack.c.b16 %v431, %v431
  %v448 = vpack.c.b16 %v432, %v432
  %v449 = vpack.c.b16 %v433, %v433
  %466 = vst [vmem:[%s3] sm:$0xf] %v434
  %467 = vst [vmem:[%s3 + $0x4] sm:$0xf] %v435
  %468 = vst [vmem:[%s3 + $0x8] sm:$0xf] %v436
  %469 = vst [vmem:[%s3 + $0xc] sm:$0xf] %v437
  %470 = vst [vmem:[%s3 + $0x10] sm:$0xf] %v438
  %471 = vst [vmem:[%s3 + $0x14] sm:$0xf] %v439
  %472 = vst [vmem:[%s3 + $0x18] sm:$0xf] %v440
  %473 = vst [vmem:[%s3 + $0x1c] sm:$0xf] %v441
  %474 = vst [vmem:[%s3 + $0x20] sm:$0xf] %v442
  %475 = vst [vmem:[%s3 + $0x24] sm:$0xf] %v443
  %476 = vst [vmem:[%s3 + $0x28] sm:$0xf] %v444
  %477 = vst [vmem:[%s3 + $0x2c] sm:$0xf] %v445
  %478 = vst [vmem:[%s3 + $0x30] sm:$0xf] %v446
  %479 = vst [vmem:[%s3 + $0x34] sm:$0xf] %v447
  %480 = vst [vmem:[%s3 + $0x38] sm:$0xf] %v448
  %481 = vst [vmem:[%s3 + $0x3c] sm:$0xf] %v449
  %vm482 = vcmask 7168
  %483 = vst.msk [vmem:[%s4] sm:$0xff] %vm482, %v65
  %484 = vst.msk [vmem:[%s4 + $0x8] sm:$0xff] %vm482, %v66
  %485 = vst.msk [vmem:[%s4 + $0x10] sm:$0xff] %vm482, %v67
  %486 = vst.msk [vmem:[%s4 + $0x18] sm:$0xff] %vm482, %v68
  %487 = vst.msk [vmem:[%s4 + $0x20] sm:$0xff] %vm482, %v69
  %488 = vst.msk [vmem:[%s4 + $0x28] sm:$0xff] %vm482, %v70
  %489 = vst.msk [vmem:[%s4 + $0x30] sm:$0xff] %vm482, %v71
  %490 = vst.msk [vmem:[%s4 + $0x38] sm:$0xff] %vm482, %v72
  %491 = vst.msk [vmem:[%s4 + $0x40] sm:$0xff] %vm482, %v73
  %492 = vst.msk [vmem:[%s4 + $0x48] sm:$0xff] %vm482, %v74
  %493 = vst.msk [vmem:[%s4 + $0x50] sm:$0xff] %vm482, %v75
  %494 = vst.msk [vmem:[%s4 + $0x58] sm:$0xff] %vm482, %v76
  %495 = vst.msk [vmem:[%s4 + $0x60] sm:$0xff] %vm482, %v77
  %496 = vst.msk [vmem:[%s4 + $0x68] sm:$0xff] %vm482, %v78
  %497 = vst.msk [vmem:[%s4 + $0x70] sm:$0xff] %vm482, %v79
  %498 = vst.msk [vmem:[%s4 + $0x78] sm:$0xff] %vm482, %v80
  // Predicated region
  $region14: #{gcn_forward.3} parent=0 // pred_check
    _
  $region15: #{gcn_forward.3} parent=0 // pred_check_branch
    %500 = sbr.rel (0) target = $region17
  $region16: #{gcn_forward.3} parent=0 // pred_region
    _
  $region17: #{gcn_forward.3} parent=0 // pred_fallthru
    _
  // Predicated region
  $region18: #{gcn_forward.3} parent=0 // pred_check
    _
  $region19: #{gcn_forward.3} parent=0 // pred_check_branch
    %502 = sbr.rel (0) target = $region21
  $region20: #{gcn_forward.3} parent=0 // pred_region
    _
  $region21: #{gcn_forward.3} parent=0 // pred_fallthru
    _
  // Predicated region
  $region22: #{gcn_forward.3} parent=0 // pred_check
    _
  $region23: #{gcn_forward.3} parent=0 // pred_check_branch
    %504 = sbr.rel (0) target = $region25
  $region24: #{gcn_forward.3} parent=0 // pred_region
    _
  $region25: #{gcn_forward.3} parent=0 // pred_fallthru
    _
  // Predicated region
  $region26: #{gcn_forward.3} parent=0 // pred_check
    _
  $region27: #{gcn_forward.3} parent=0 // pred_check_branch
    %506 = sbr.rel (0) target = $region29
  $region28: #{gcn_forward.3} parent=0 // pred_region
    _
  $region29: #{gcn_forward.3} parent=0 // pred_fallthru
    _

// kernel: gcn_forward.4
$region0: #{gcn_forward.4}
  #allocation0 [shape = 'u32[]', space=smem, size = 0x4, offset = 0x4, fixed_abs, tag = 'smem constant byte address 0x4 - core index']
  #allocation1 [shape = 'u32[144,128]{1,0:T(1,128)}', space=vmem, size = 0x12000, scoped, tag = 'internal scratch']
  #allocation2 [shape = 'f32[128,128]{1,0:T(8,128)}', space=vmem, size = 0x10000, scoped, tag = 'scratch operand']
  %s0 = inlined_call_operand.vmem [shape: s8[128,128], index: 0, kind: input, shape index: {}]
  %s1 = inlined_call_operand.vmem [shape: bf16[128,128], index: 1, kind: input, shape index: {}]
  %s2 = inlined_call_operand.vmem [shape: f32[128,1], index: 2, kind: input, shape index: {}]
  %s3 = inlined_call_operand.vmem [shape: f32[1,128], index: 3, kind: input, shape index: {}]
  %s4 = inlined_call_operand.vmem [shape: bf16[128,128], index: 4, kind: input, shape index: {}]
  %s5 = inlined_call_operand.vmem [shape: bf16[128,128], index: 5, kind: output, shape index: {}]
  %s6 = sld [smem:[#allocation0]]
  $region38: #{gcn_forward.4} parent=0
    _
  %s8 = ssub.s32 1, %s6
  %s9 = scalar_select 0, %s8, %s6
  // Predicated region
  $region2: #{gcn_forward.4} parent=0 // pred_check
    _
  $region3: #{gcn_forward.4} parent=0 // pred_check_branch
    %11 = sbr.rel (0) target = $region5
  $region4: #{gcn_forward.4} parent=0 // pred_region
    _
  $region5: #{gcn_forward.4} parent=0 // pred_fallthru
    _
  // Predicated region
  $region6: #{gcn_forward.4} parent=0 // pred_check
    _
  $region7: #{gcn_forward.4} parent=0 // pred_check_branch
    %13 = sbr.rel (0) target = $region9
  $region8: #{gcn_forward.4} parent=0 // pred_region
    _
  $region9: #{gcn_forward.4} parent=0 // pred_fallthru
    _
  // Predicated region
  $region10: #{gcn_forward.4} parent=0 // pred_check
    _
  $region11: #{gcn_forward.4} parent=0 // pred_check_branch
    %15 = sbr.rel (0) target = $region13
  $region12: #{gcn_forward.4} parent=0 // pred_region
    _
  $region13: #{gcn_forward.4} parent=0 // pred_fallthru
    _
  // Predicated region
  $region14: #{gcn_forward.4} parent=0 // pred_check
    _
  $region15: #{gcn_forward.4} parent=0 // pred_check_branch
    %17 = sbr.rel (0) target = $region17
  $region16: #{gcn_forward.4} parent=0 // pred_region
    _
  $region17: #{gcn_forward.4} parent=0 // pred_fallthru
    _
  // Predicated region
  $region18: #{gcn_forward.4} parent=0 // pred_check
    _
  $region19: #{gcn_forward.4} parent=0 // pred_check_branch
    %19 = sbr.rel (0) target = $region21
  $region20: #{gcn_forward.4} parent=0 // pred_region
    _
  $region21: #{gcn_forward.4} parent=0 // pred_fallthru
    _
  %p21 = scmp.eq.s32.totalorder 0, 0
  // Predicated region
  $region22: #{gcn_forward.4} parent=0 // pred_check
    %p22 = pneg %p21
  $region23: #{gcn_forward.4} parent=0 // pred_check_branch
    %24 = sbr.rel (%p22) target = $region25
  $region24: #{gcn_forward.4} parent=0 // pred_region
    %25 = vst [vmem:[#allocation2] sm:$0xff] 0.0
    %26 = vst [vmem:[#allocation2 + $0x8] sm:$0xff] 0.0
    %27 = vst [vmem:[#allocation2 + $0x10] sm:$0xff] 0.0
    %28 = vst [vmem:[#allocation2 + $0x18] sm:$0xff] 0.0
    %29 = vst [vmem:[#allocation2 + $0x20] sm:$0xff] 0.0
    %30 = vst [vmem:[#allocation2 + $0x28] sm:$0xff] 0.0
    %31 = vst [vmem:[#allocation2 + $0x30] sm:$0xff] 0.0
    %32 = vst [vmem:[#allocation2 + $0x38] sm:$0xff] 0.0
    %33 = vst [vmem:[#allocation2 + $0x40] sm:$0xff] 0.0
    %34 = vst [vmem:[#allocation2 + $0x48] sm:$0xff] 0.0
    %35 = vst [vmem:[#allocation2 + $0x50] sm:$0xff] 0.0
    %36 = vst [vmem:[#allocation2 + $0x58] sm:$0xff] 0.0
    %37 = vst [vmem:[#allocation2 + $0x60] sm:$0xff] 0.0
    %38 = vst [vmem:[#allocation2 + $0x68] sm:$0xff] 0.0
    %39 = vst [vmem:[#allocation2 + $0x70] sm:$0xff] 0.0
    %40 = vst [vmem:[#allocation2 + $0x78] sm:$0xff] 0.0
  $region25: #{gcn_forward.4} parent=0 // pred_fallthru
    _
  %v41 = vld [vmem:[#allocation2] sm:$0xff]
  %v42 = vld [vmem:[#allocation2 + $0x8] sm:$0xff]
  %v43 = vld [vmem:[#allocation2 + $0x10] sm:$0xff]
  %v44 = vld [vmem:[#allocation2 + $0x18] sm:$0xff]
  %v45 = vld [vmem:[#allocation2 + $0x20] sm:$0xff]
  %v46 = vld [vmem:[#allocation2 + $0x28] sm:$0xff]
  %v47 = vld [vmem:[#allocation2 + $0x30] sm:$0xff]
  %v48 = vld [vmem:[#allocation2 + $0x38] sm:$0xff]
  %v49 = vld [vmem:[#allocation2 + $0x40] sm:$0xff]
  %v50 = vld [vmem:[#allocation2 + $0x48] sm:$0xff]
  %v51 = vld [vmem:[#allocation2 + $0x50] sm:$0xff]
  %v52 = vld [vmem:[#allocation2 + $0x58] sm:$0xff]
  %v53 = vld [vmem:[#allocation2 + $0x60] sm:$0xff]
  %v54 = vld [vmem:[#allocation2 + $0x68] sm:$0xff]
  %v55 = vld [vmem:[#allocation2 + $0x70] sm:$0xff]
  %v56 = vld [vmem:[#allocation2 + $0x78] sm:$0xff]
  %v57 = vld [vmem:[%s0] sm:$0x3]
  %v58 = vld [vmem:[%s0 + $0x2] sm:$0x3]
  %v59 = vld [vmem:[%s0 + $0x4] sm:$0x3]
  %v60 = vld [vmem:[%s0 + $0x6] sm:$0x3]
  %v61 = vld [vmem:[%s0 + $0x8] sm:$0x3]
  %v62 = vld [vmem:[%s0 + $0xa] sm:$0x3]
  %v63 = vld [vmem:[%s0 + $0xc] sm:$0x3]
  %v64 = vld [vmem:[%s0 + $0xe] sm:$0x3]
  %v65 = vld [vmem:[%s0 + $0x10] sm:$0x3]
  %v66 = vld [vmem:[%s0 + $0x12] sm:$0x3]
  %v67 = vld [vmem:[%s0 + $0x14] sm:$0x3]
  %v68 = vld [vmem:[%s0 + $0x16] sm:$0x3]
  %v69 = vld [vmem:[%s0 + $0x18] sm:$0x3]
  %v70 = vld [vmem:[%s0 + $0x1a] sm:$0x3]
  %v71 = vld [vmem:[%s0 + $0x1c] sm:$0x3]
  %v72 = vld [vmem:[%s0 + $0x1e] sm:$0x3]
  %v73 = vunpack.c.l.s8.bf16 %v57
  %v74 = vunpack.c.l.s8.bf16 %v58
  %v75 = vunpack.c.l.s8.bf16 %v59
  %v76 = vunpack.c.l.s8.bf16 %v60
  %v77 = vunpack.c.l.s8.bf16 %v61
  %v78 = vunpack.c.l.s8.bf16 %v62
  %v79 = vunpack.c.l.s8.bf16 %v63
  %v80 = vunpack.c.l.s8.bf16 %v64
  %v81 = vunpack.c.l.s8.bf16 %v65
  %v82 = vunpack.c.l.s8.bf16 %v66
  %v83 = vunpack.c.l.s8.bf16 %v67
  %v84 = vunpack.c.l.s8.bf16 %v68
  %v85 = vunpack.c.l.s8.bf16 %v69
  %v86 = vunpack.c.l.s8.bf16 %v70
  %v87 = vunpack.c.l.s8.bf16 %v71
  %v88 = vunpack.c.l.s8.bf16 %v72
  %v89 = vld [vmem:[%s1] sm:$0xf]
  %v90 = vld [vmem:[%s1 + $0x4] sm:$0xf]
  %v91 = vld [vmem:[%s1 + $0x8] sm:$0xf]
  %v92 = vld [vmem:[%s1 + $0xc] sm:$0xf]
  %v93 = vld [vmem:[%s1 + $0x10] sm:$0xf]
  %v94 = vld [vmem:[%s1 + $0x14] sm:$0xf]
  %v95 = vld [vmem:[%s1 + $0x18] sm:$0xf]
  %v96 = vld [vmem:[%s1 + $0x1c] sm:$0xf]
  %v97 = vld [vmem:[%s1 + $0x20] sm:$0xf]
  %v98 = vld [vmem:[%s1 + $0x24] sm:$0xf]
  %v99 = vld [vmem:[%s1 + $0x28] sm:$0xf]
  %v100 = vld [vmem:[%s1 + $0x2c] sm:$0xf]
  %v101 = vld [vmem:[%s1 + $0x30] sm:$0xf]
  %v102 = vld [vmem:[%s1 + $0x34] sm:$0xf]
  %v103 = vld [vmem:[%s1 + $0x38] sm:$0xf]
  %v104 = vld [vmem:[%s1 + $0x3c] sm:$0xf]
  %v121 = vunpack.c.l.b16 %v73
  %v122 = vunpack.c.l.b16 %v74
  %v123 = vunpack.c.l.b16 %v75
  %v124 = vunpack.c.l.b16 %v76
  %v125 = vunpack.c.l.b16 %v77
  %v126 = vunpack.c.l.b16 %v78
  %v127 = vunpack.c.l.b16 %v79
  %v128 = vunpack.c.l.b16 %v80
  %v129 = vunpack.c.l.b16 %v81
  %v130 = vunpack.c.l.b16 %v82
  %v131 = vunpack.c.l.b16 %v83
  %v132 = vunpack.c.l.b16 %v84
  %v133 = vunpack.c.l.b16 %v85
  %v134 = vunpack.c.l.b16 %v86
  %v135 = vunpack.c.l.b16 %v87
  %v136 = vunpack.c.l.b16 %v88
  %v137 = vpack.c.b16 %v122, %v121
  %v138 = vpack.c.b16 %v124, %v123
  %v139 = vpack.c.b16 %v126, %v125
  %v140 = vpack.c.b16 %v128, %v127
  %v141 = vpack.c.b16 %v130, %v129
  %v142 = vpack.c.b16 %v132, %v131
  %v143 = vpack.c.b16 %v134, %v133
  %v144 = vpack.c.b16 %v136, %v135
  %v169 = vunpack.c.l.b16 %v89
  %v170 = vunpack.c.l.b16 %v90
  %v171 = vunpack.c.l.b16 %v91
  %v172 = vunpack.c.l.b16 %v92
  %v173 = vunpack.c.l.b16 %v93
  %v174 = vunpack.c.l.b16 %v94
  %v175 = vunpack.c.l.b16 %v95
  %v176 = vunpack.c.l.b16 %v96
  %v177 = vunpack.c.l.b16 %v97
  %v178 = vunpack.c.l.b16 %v98
  %v179 = vunpack.c.l.b16 %v99
  %v180 = vunpack.c.l.b16 %v100
  %v181 = vunpack.c.l.b16 %v101
  %v182 = vunpack.c.l.b16 %v102
  %v183 = vunpack.c.l.b16 %v103
  %v184 = vunpack.c.l.b16 %v104
  %v185 = vpack.c.b16 %v170, %v169
  %v186 = vpack.c.b16 %v172, %v171
  %v187 = vpack.c.b16 %v174, %v173
  %v188 = vpack.c.b16 %v176, %v175
  %v189 = vpack.c.b16 %v178, %v177
  %v190 = vpack.c.b16 %v180, %v179
  %v191 = vpack.c.b16 %v182, %v181
  %v192 = vpack.c.b16 %v184, %v183
  %201 = vmatprep.subr.bf16.mxu0 0
  %202 = vmatpush1.bf16.msra.mxu0 %v192
  %203 = vmatprep.subr.bf16.mxu0 0
  %204 = vmatpush1.bf16.msra.mxu0 %v191
  %205 = vmatprep.subr.bf16.mxu0 0
  %206 = vmatpush1.bf16.msra.mxu0 %v190
  %207 = vmatprep.subr.bf16.mxu0 0
  %208 = vmatpush1.bf16.msra.mxu0 %v189
  %209 = vmatprep.subr.bf16.mxu0 0
  %210 = vmatpush1.bf16.msra.mxu0 %v188
  %211 = vmatprep.subr.bf16.mxu0 0
  %212 = vmatpush1.bf16.msra.mxu0 %v187
  %213 = vmatprep.subr.bf16.mxu0 0
  %214 = vmatpush1.bf16.msra.mxu0 %v186
  %215 = vmatprep.subr.bf16.mxu0 0
  %216 = vmatpush1.bf16.msra.mxu0 %v185
  %217 = vmatprep.subr.bf16.mxu0 0
  %218 = vmatpush2.bf16.msra.mxu0 0
  %219 = vmatprep.subr.bf16.mxu0 0
  %220 = vmatpush2.bf16.msra.mxu0 0
  %221 = vmatprep.subr.bf16.mxu0 0
  %222 = vmatpush2.bf16.msra.mxu0 0
  %223 = vmatprep.subr.bf16.mxu0 0
  %224 = vmatpush2.bf16.msra.mxu0 0
  %225 = vmatprep.subr.bf16.mxu0 0
  %226 = vmatpush2.bf16.msra.mxu0 0
  %227 = vmatprep.subr.bf16.mxu0 0
  %228 = vmatpush2.bf16.msra.mxu0 0
  %229 = vmatprep.subr.bf16.mxu0 0
  %230 = vmatpush2.bf16.msra.mxu0 0
  %231 = vmatprep.subr.bf16.mxu0 0
  %232 = vmatpush2.bf16.msra.mxu0 0
  %233 = vmatprep.mubr.bf16.mxu0 0
  %234 = vmatmul.mubr.bf16.gmra.mxu0 %v137
  %v235 = vpop.f32.mrf.mxu0
  %v236 = vadd.f32 0.0, %v235
  %v237 = vpop.f32.mrf.mxu0
  %v238 = vpop.f32.mrf.mxu0
  %v239 = vadd.f32 0.0, %v238
  %v240 = vpop.f32.mrf.mxu0
  %241 = vmatprep.mubr.bf16.mxu0 0
  %242 = vmatmul.mubr.bf16.gmra.mxu0 %v138
  %v243 = vpop.f32.mrf.mxu0
  %v244 = vadd.f32 0.0, %v243
  %v245 = vpop.f32.mrf.mxu0
  %v246 = vpop.f32.mrf.mxu0
  %v247 = vadd.f32 0.0, %v246
  %v248 = vpop.f32.mrf.mxu0
  %249 = vmatprep.mubr.bf16.mxu0 0
  %250 = vmatmul.mubr.bf16.gmra.mxu0 %v139
  %v251 = vpop.f32.mrf.mxu0
  %v252 = vadd.f32 0.0, %v251
  %v253 = vpop.f32.mrf.mxu0
  %v254 = vpop.f32.mrf.mxu0
  %v255 = vadd.f32 0.0, %v254
  %v256 = vpop.f32.mrf.mxu0
  %257 = vmatprep.mubr.bf16.mxu0 0
  %258 = vmatmul.mubr.bf16.gmra.mxu0 %v140
  %v259 = vpop.f32.mrf.mxu0
  %v260 = vadd.f32 0.0, %v259
  %v261 = vpop.f32.mrf.mxu0
  %v262 = vpop.f32.mrf.mxu0
  %v263 = vadd.f32 0.0, %v262
  %v264 = vpop.f32.mrf.mxu0
  %265 = vmatprep.mubr.bf16.mxu0 0
  %266 = vmatmul.mubr.bf16.gmra.mxu0 %v141
  %v267 = vpop.f32.mrf.mxu0
  %v268 = vadd.f32 0.0, %v267
  %v269 = vpop.f32.mrf.mxu0
  %v270 = vpop.f32.mrf.mxu0
  %v271 = vadd.f32 0.0, %v270
  %v272 = vpop.f32.mrf.mxu0
  %273 = vmatprep.mubr.bf16.mxu0 0
  %274 = vmatmul.mubr.bf16.gmra.mxu0 %v142
  %v275 = vpop.f32.mrf.mxu0
  %v276 = vadd.f32 0.0, %v275
  %v277 = vpop.f32.mrf.mxu0
  %v278 = vpop.f32.mrf.mxu0
  %v279 = vadd.f32 0.0, %v278
  %v280 = vpop.f32.mrf.mxu0
  %281 = vmatprep.mubr.bf16.mxu0 0
  %282 = vmatmul.mubr.bf16.gmra.mxu0 %v143
  %v283 = vpop.f32.mrf.mxu0
  %v284 = vadd.f32 0.0, %v283
  %v285 = vpop.f32.mrf.mxu0
  %v286 = vpop.f32.mrf.mxu0
  %v287 = vadd.f32 0.0, %v286
  %v288 = vpop.f32.mrf.mxu0
  %289 = vmatprep.mubr.bf16.mxu0 0
  %290 = vmatmul.mubr.bf16.gmra.mxu0 %v144
  %v291 = vpop.f32.mrf.mxu0
  %v292 = vadd.f32 0.0, %v291
  %v293 = vpop.f32.mrf.mxu0
  %v294 = vpop.f32.mrf.mxu0
  %v295 = vadd.f32 0.0, %v294
  %v296 = vpop.f32.mrf.mxu0
  %297 = vdwg.mxu0
  %v298 = vadd.f32 %v41, %v236
  %v299 = vadd.f32 %v42, %v239
  %v300 = vadd.f32 %v43, %v244
  %v301 = vadd.f32 %v44, %v247
  %v302 = vadd.f32 %v45, %v252
  %v303 = vadd.f32 %v46, %v255
  %v304 = vadd.f32 %v47, %v260
  %v305 = vadd.f32 %v48, %v263
  %v306 = vadd.f32 %v49, %v268
  %v307 = vadd.f32 %v50, %v271
  %v308 = vadd.f32 %v51, %v276
  %v309 = vadd.f32 %v52, %v279
  %v310 = vadd.f32 %v53, %v284
  %v311 = vadd.f32 %v54, %v287
  %v312 = vadd.f32 %v55, %v292
  %v313 = vadd.f32 %v56, %v295
  %314 = vst [vmem:[#allocation2] sm:$0xff] %v298
  %315 = vst [vmem:[#allocation2 + $0x8] sm:$0xff] %v299
  %316 = vst [vmem:[#allocation2 + $0x10] sm:$0xff] %v300
  %317 = vst [vmem:[#allocation2 + $0x18] sm:$0xff] %v301
  %318 = vst [vmem:[#allocation2 + $0x20] sm:$0xff] %v302
  %319 = vst [vmem:[#allocation2 + $0x28] sm:$0xff] %v303
  %320 = vst [vmem:[#allocation2 + $0x30] sm:$0xff] %v304
  %321 = vst [vmem:[#allocation2 + $0x38] sm:$0xff] %v305
  %322 = vst [vmem:[#allocation2 + $0x40] sm:$0xff] %v306
  %323 = vst [vmem:[#allocation2 + $0x48] sm:$0xff] %v307
  %324 = vst [vmem:[#allocation2 + $0x50] sm:$0xff] %v308
  %325 = vst [vmem:[#allocation2 + $0x58] sm:$0xff] %v309
  %326 = vst [vmem:[#allocation2 + $0x60] sm:$0xff] %v310
  %327 = vst [vmem:[#allocation2 + $0x68] sm:$0xff] %v311
  %328 = vst [vmem:[#allocation2 + $0x70] sm:$0xff] %v312
  %329 = vst [vmem:[#allocation2 + $0x78] sm:$0xff] %v313
  // Predicated region
  $region26: #{gcn_forward.4} parent=0 // pred_check
    %p330 = pneg %p21
  $region27: #{gcn_forward.4} parent=0 // pred_check_branch
    %332 = sbr.rel (%p330) target = $region29
  $region28: #{gcn_forward.4} parent=0 // pred_region
    %v333 = vld [vmem:[%s2] sm:$0xff]
    %v334 = vld [vmem:[%s2 + $0x8] sm:$0xff]
    %v335 = vld [vmem:[%s2 + $0x10] sm:$0xff]
    %v336 = vld [vmem:[%s2 + $0x18] sm:$0xff]
    %v337 = vld [vmem:[%s2 + $0x20] sm:$0xff]
    %v338 = vld [vmem:[%s2 + $0x28] sm:$0xff]
    %v339 = vld [vmem:[%s2 + $0x30] sm:$0xff]
    %v340 = vld [vmem:[%s2 + $0x38] sm:$0xff]
    %v341 = vld [vmem:[%s2 + $0x40] sm:$0xff]
    %v342 = vld [vmem:[%s2 + $0x48] sm:$0xff]
    %v343 = vld [vmem:[%s2 + $0x50] sm:$0xff]
    %v344 = vld [vmem:[%s2 + $0x58] sm:$0xff]
    %v345 = vld [vmem:[%s2 + $0x60] sm:$0xff]
    %v346 = vld [vmem:[%s2 + $0x68] sm:$0xff]
    %v347 = vld [vmem:[%s2 + $0x70] sm:$0xff]
    %v348 = vld [vmem:[%s2 + $0x78] sm:$0xff]
    %v349 = vld [vmem:[#allocation2] sm:$0xff]
    %v350 = vld [vmem:[#allocation2 + $0x8] sm:$0xff]
    %v351 = vld [vmem:[#allocation2 + $0x10] sm:$0xff]
    %v352 = vld [vmem:[#allocation2 + $0x18] sm:$0xff]
    %v353 = vld [vmem:[#allocation2 + $0x20] sm:$0xff]
    %v354 = vld [vmem:[#allocation2 + $0x28] sm:$0xff]
    %v355 = vld [vmem:[#allocation2 + $0x30] sm:$0xff]
    %v356 = vld [vmem:[#allocation2 + $0x38] sm:$0xff]
    %v357 = vld [vmem:[#allocation2 + $0x40] sm:$0xff]
    %v358 = vld [vmem:[#allocation2 + $0x48] sm:$0xff]
    %v359 = vld [vmem:[#allocation2 + $0x50] sm:$0xff]
    %v360 = vld [vmem:[#allocation2 + $0x58] sm:$0xff]
    %v361 = vld [vmem:[#allocation2 + $0x60] sm:$0xff]
    %v362 = vld [vmem:[#allocation2 + $0x68] sm:$0xff]
    %v363 = vld [vmem:[#allocation2 + $0x70] sm:$0xff]
    %v364 = vld [vmem:[#allocation2 + $0x78] sm:$0xff]
    %366 = vset.pattern.permute.xlu0 0
    %367 = vperm.xlu0 %366, %v333
    %v368 = vpop.permute.xlu0 %367
    %371 = vset.pattern.permute.xlu0 0
    %372 = vperm.xlu0 %371, %v334
    %v373 = vpop.permute.xlu0 %372
    %376 = vset.pattern.permute.xlu0 0
    %377 = vperm.xlu0 %376, %v335
    %v378 = vpop.permute.xlu0 %377
    %381 = vset.pattern.permute.xlu0 0
    %382 = vperm.xlu0 %381, %v336
    %v383 = vpop.permute.xlu0 %382
    %386 = vset.pattern.permute.xlu0 0
    %387 = vperm.xlu0 %386, %v337
    %v388 = vpop.permute.xlu0 %387
    %391 = vset.pattern.permute.xlu0 0
    %392 = vperm.xlu0 %391, %v338
    %v393 = vpop.permute.xlu0 %392
    %396 = vset.pattern.permute.xlu0 0
    %397 = vperm.xlu0 %396, %v339
    %v398 = vpop.permute.xlu0 %397
    %401 = vset.pattern.permute.xlu0 0
    %402 = vperm.xlu0 %401, %v340
    %v403 = vpop.permute.xlu0 %402
    %406 = vset.pattern.permute.xlu0 0
    %407 = vperm.xlu0 %406, %v341
    %v408 = vpop.permute.xlu0 %407
    %411 = vset.pattern.permute.xlu0 0
    %412 = vperm.xlu0 %411, %v342
    %v413 = vpop.permute.xlu0 %412
    %416 = vset.pattern.permute.xlu0 0
    %417 = vperm.xlu0 %416, %v343
    %v418 = vpop.permute.xlu0 %417
    %421 = vset.pattern.permute.xlu0 0
    %422 = vperm.xlu0 %421, %v344
    %v423 = vpop.permute.xlu0 %422
    %426 = vset.pattern.permute.xlu0 0
    %427 = vperm.xlu0 %426, %v345
    %v428 = vpop.permute.xlu0 %427
    %431 = vset.pattern.permute.xlu0 0
    %432 = vperm.xlu0 %431, %v346
    %v433 = vpop.permute.xlu0 %432
    %436 = vset.pattern.permute.xlu0 0
    %437 = vperm.xlu0 %436, %v347
    %v438 = vpop.permute.xlu0 %437
    %441 = vset.pattern.permute.xlu0 0
    %442 = vperm.xlu0 %441, %v348
    %v443 = vpop.permute.xlu0 %442
    %v445 = vmul.f32 %v349, %v368
    %v446 = vmul.f32 %v350, %v373
    %v447 = vmul.f32 %v351, %v378
    %v448 = vmul.f32 %v352, %v383
    %v449 = vmul.f32 %v353, %v388
    %v450 = vmul.f32 %v354, %v393
    %v451 = vmul.f32 %v355, %v398
    %v452 = vmul.f32 %v356, %v403
    %v453 = vmul.f32 %v357, %v408
    %v454 = vmul.f32 %v358, %v413
    %v455 = vmul.f32 %v359, %v418
    %v456 = vmul.f32 %v360, %v423
    %v457 = vmul.f32 %v361, %v428
    %v458 = vmul.f32 %v362, %v433
    %v459 = vmul.f32 %v363, %v438
    %v460 = vmul.f32 %v364, %v443
    %v461 = vld [vmem:[%s3] sm:$0x1]
    %v463 = vlaneseq
    %v464 = vshrl.u32 %v463, 7
    %v465 = vsub.s32 0, %v464
    %v466 = vrot.slane %v461, %v465
    %v468 = vadd.f32 %v445, %v466
    %v469 = vadd.f32 %v446, %v466
    %v470 = vadd.f32 %v447, %v466
    %v471 = vadd.f32 %v448, %v466
    %v472 = vadd.f32 %v449, %v466
    %v473 = vadd.f32 %v450, %v466
    %v474 = vadd.f32 %v451, %v466
    %v475 = vadd.f32 %v452, %v466
    %v476 = vadd.f32 %v453, %v466
    %v477 = vadd.f32 %v454, %v466
    %v478 = vadd.f32 %v455, %v466
    %v479 = vadd.f32 %v456, %v466
    %v480 = vadd.f32 %v457, %v466
    %v481 = vadd.f32 %v458, %v466
    %v482 = vadd.f32 %v459, %v466
    %v483 = vadd.f32 %v460, %v466
    %v484 = vmax.f32 %v468, 0.0
    %v485 = vmax.f32 %v469, 0.0
    %v486 = vmax.f32 %v470, 0.0
    %v487 = vmax.f32 %v471, 0.0
    %v488 = vmax.f32 %v472, 0.0
    %v489 = vmax.f32 %v473, 0.0
    %v490 = vmax.f32 %v474, 0.0
    %v491 = vmax.f32 %v475, 0.0
    %v492 = vmax.f32 %v476, 0.0
    %v493 = vmax.f32 %v477, 0.0
    %v494 = vmax.f32 %v478, 0.0
    %v495 = vmax.f32 %v479, 0.0
    %v496 = vmax.f32 %v480, 0.0
    %v497 = vmax.f32 %v481, 0.0
    %v498 = vmax.f32 %v482, 0.0
    %v499 = vmax.f32 %v483, 0.0
    %v500 = vpack.c.bf16 %v485, %v484
    %v501 = vpack.c.bf16 %v487, %v486
    %v502 = vpack.c.bf16 %v489, %v488
    %v503 = vpack.c.bf16 %v491, %v490
    %v504 = vpack.c.bf16 %v493, %v492
    %v505 = vpack.c.bf16 %v495, %v494
    %v506 = vpack.c.bf16 %v497, %v496
    %v507 = vpack.c.bf16 %v499, %v498
    %v508 = vld [vmem:[%s4] sm:$0xf]
    %v509 = vld [vmem:[%s4 + $0x4] sm:$0xf]
    %v510 = vld [vmem:[%s4 + $0x8] sm:$0xf]
    %v511 = vld [vmem:[%s4 + $0xc] sm:$0xf]
    %v512 = vld [vmem:[%s4 + $0x10] sm:$0xf]
    %v513 = vld [vmem:[%s4 + $0x14] sm:$0xf]
    %v514 = vld [vmem:[%s4 + $0x18] sm:$0xf]
    %v515 = vld [vmem:[%s4 + $0x1c] sm:$0xf]
    %v516 = vld [vmem:[%s4 + $0x20] sm:$0xf]
    %v517 = vld [vmem:[%s4 + $0x24] sm:$0xf]
    %v518 = vld [vmem:[%s4 + $0x28] sm:$0xf]
    %v519 = vld [vmem:[%s4 + $0x2c] sm:$0xf]
    %v520 = vld [vmem:[%s4 + $0x30] sm:$0xf]
    %v521 = vld [vmem:[%s4 + $0x34] sm:$0xf]
    %v522 = vld [vmem:[%s4 + $0x38] sm:$0xf]
    %v523 = vld [vmem:[%s4 + $0x3c] sm:$0xf]
    %v540 = vunpack.c.l.b16 %v508
    %v541 = vunpack.c.l.b16 %v509
    %v542 = vunpack.c.l.b16 %v510
    %v543 = vunpack.c.l.b16 %v511
    %v544 = vunpack.c.l.b16 %v512
    %v545 = vunpack.c.l.b16 %v513
    %v546 = vunpack.c.l.b16 %v514
    %v547 = vunpack.c.l.b16 %v515
    %v548 = vunpack.c.l.b16 %v516
    %v549 = vunpack.c.l.b16 %v517
    %v550 = vunpack.c.l.b16 %v518
    %v551 = vunpack.c.l.b16 %v519
    %v552 = vunpack.c.l.b16 %v520
    %v553 = vunpack.c.l.b16 %v521
    %v554 = vunpack.c.l.b16 %v522
    %v555 = vunpack.c.l.b16 %v523
    %v556 = vpack.c.b16 %v541, %v540
    %v557 = vpack.c.b16 %v543, %v542
    %v558 = vpack.c.b16 %v545, %v544
    %v559 = vpack.c.b16 %v547, %v546
    %v560 = vpack.c.b16 %v549, %v548
    %v561 = vpack.c.b16 %v551, %v550
    %v562 = vpack.c.b16 %v553, %v552
    %v563 = vpack.c.b16 %v555, %v554
    %572 = vmatprep.subr.bf16.mxu0 0
    %573 = vmatpush1.bf16.msra.mxu0 %v563
    %574 = vmatprep.subr.bf16.mxu0 0
    %575 = vmatpush1.bf16.msra.mxu0 %v562
    %576 = vmatprep.subr.bf16.mxu0 0
    %577 = vmatpush1.bf16.msra.mxu0 %v561
    %578 = vmatprep.subr.bf16.mxu0 0
    %579 = vmatpush1.bf16.msra.mxu0 %v560
    %580 = vmatprep.subr.bf16.mxu0 0
    %581 = vmatpush1.bf16.msra.mxu0 %v559
    %582 = vmatprep.subr.bf16.mxu0 0
    %583 = vmatpush1.bf16.msra.mxu0 %v558
    %584 = vmatprep.subr.bf16.mxu0 0
    %585 = vmatpush1.bf16.msra.mxu0 %v557
    %586 = vmatprep.subr.bf16.mxu0 0
    %587 = vmatpush1.bf16.msra.mxu0 %v556
    %588 = vmatprep.subr.bf16.mxu0 0
    %589 = vmatpush2.bf16.msra.mxu0 0
    %590 = vmatprep.subr.bf16.mxu0 0
    %591 = vmatpush2.bf16.msra.mxu0 0
    %592 = vmatprep.subr.bf16.mxu0 0
    %593 = vmatpush2.bf16.msra.mxu0 0
    %594 = vmatprep.subr.bf16.mxu0 0
    %595 = vmatpush2.bf16.msra.mxu0 0
    %596 = vmatprep.subr.bf16.mxu0 0
    %597 = vmatpush2.bf16.msra.mxu0 0
    %598 = vmatprep.subr.bf16.mxu0 0
    %599 = vmatpush2.bf16.msra.mxu0 0
    %600 = vmatprep.subr.bf16.mxu0 0
    %601 = vmatpush2.bf16.msra.mxu0 0
    %602 = vmatprep.subr.bf16.mxu0 0
    %603 = vmatpush2.bf16.msra.mxu0 0
    %604 = vmatprep.mubr.bf16.mxu0 0
    %605 = vmatmul.mubr.bf16.gmra.mxu0 %v500
    %v606 = vpop.f32.mrf.mxu0
    %v607 = vadd.f32 0.0, %v606
    %v608 = vpop.f32.mrf.mxu0
    %v609 = vpop.f32.mrf.mxu0
    %v610 = vadd.f32 0.0, %v609
    %v611 = vpop.f32.mrf.mxu0
    %612 = vmatprep.mubr.bf16.mxu0 0
    %613 = vmatmul.mubr.bf16.gmra.mxu0 %v501
    %v614 = vpop.f32.mrf.mxu0
    %v615 = vadd.f32 0.0, %v614
    %v616 = vpop.f32.mrf.mxu0
    %v617 = vpop.f32.mrf.mxu0
    %v618 = vadd.f32 0.0, %v617
    %v619 = vpop.f32.mrf.mxu0
    %620 = vmatprep.mubr.bf16.mxu0 0
    %621 = vmatmul.mubr.bf16.gmra.mxu0 %v502
    %v622 = vpop.f32.mrf.mxu0
    %v623 = vadd.f32 0.0, %v622
    %v624 = vpop.f32.mrf.mxu0
    %v625 = vpop.f32.mrf.mxu0
    %v626 = vadd.f32 0.0, %v625
    %v627 = vpop.f32.mrf.mxu0
    %628 = vmatprep.mubr.bf16.mxu0 0
    %629 = vmatmul.mubr.bf16.gmra.mxu0 %v503
    %v630 = vpop.f32.mrf.mxu0
    %v631 = vadd.f32 0.0, %v630
    %v632 = vpop.f32.mrf.mxu0
    %v633 = vpop.f32.mrf.mxu0
    %v634 = vadd.f32 0.0, %v633
    %v635 = vpop.f32.mrf.mxu0
    %636 = vmatprep.mubr.bf16.mxu0 0
    %637 = vmatmul.mubr.bf16.gmra.mxu0 %v504
    %v638 = vpop.f32.mrf.mxu0
    %v639 = vadd.f32 0.0, %v638
    %v640 = vpop.f32.mrf.mxu0
    %v641 = vpop.f32.mrf.mxu0
    %v642 = vadd.f32 0.0, %v641
    %v643 = vpop.f32.mrf.mxu0
    %644 = vmatprep.mubr.bf16.mxu0 0
    %645 = vmatmul.mubr.bf16.gmra.mxu0 %v505
    %v646 = vpop.f32.mrf.mxu0
    %v647 = vadd.f32 0.0, %v646
    %v648 = vpop.f32.mrf.mxu0
    %v649 = vpop.f32.mrf.mxu0
    %v650 = vadd.f32 0.0, %v649
    %v651 = vpop.f32.mrf.mxu0
    %652 = vmatprep.mubr.bf16.mxu0 0
    %653 = vmatmul.mubr.bf16.gmra.mxu0 %v506
    %v654 = vpop.f32.mrf.mxu0
    %v655 = vadd.f32 0.0, %v654
    %v656 = vpop.f32.mrf.mxu0
    %v657 = vpop.f32.mrf.mxu0
    %v658 = vadd.f32 0.0, %v657
    %v659 = vpop.f32.mrf.mxu0
    %660 = vmatprep.mubr.bf16.mxu0 0
    %661 = vmatmul.mubr.bf16.gmra.mxu0 %v507
    %v662 = vpop.f32.mrf.mxu0
    %v663 = vadd.f32 0.0, %v662
    %v664 = vpop.f32.mrf.mxu0
    %v665 = vpop.f32.mrf.mxu0
    %v666 = vadd.f32 0.0, %v665
    %v667 = vpop.f32.mrf.mxu0
    %668 = vdwg.mxu0
    %v669 = vmul.f32 %v607, %v368
    %v670 = vmul.f32 %v610, %v373
    %v671 = vmul.f32 %v615, %v378
    %v672 = vmul.f32 %v618, %v383
    %v673 = vmul.f32 %v623, %v388
    %v674 = vmul.f32 %v626, %v393
    %v675 = vmul.f32 %v631, %v398
    %v676 = vmul.f32 %v634, %v403
    %v677 = vmul.f32 %v639, %v408
    %v678 = vmul.f32 %v642, %v413
    %v679 = vmul.f32 %v647, %v418
    %v680 = vmul.f32 %v650, %v423
    %v681 = vmul.f32 %v655, %v428
    %v682 = vmul.f32 %v658, %v433
    %v683 = vmul.f32 %v663, %v438
    %v684 = vmul.f32 %v666, %v443
    %v685 = vpack.c.bf16 %v670, %v669
    %v686 = vpack.c.bf16 %v672, %v671
    %v687 = vpack.c.bf16 %v674, %v673
    %v688 = vpack.c.bf16 %v676, %v675
    %v689 = vpack.c.bf16 %v678, %v677
    %v690 = vpack.c.bf16 %v680, %v679
    %v691 = vpack.c.bf16 %v682, %v681
    %v692 = vpack.c.bf16 %v684, %v683
    %v701 = vunpack.c.l.b16 %v685
    %v702 = vunpack.c.h.b16 %v685
    %v703 = vunpack.c.l.b16 %v686
    %v704 = vunpack.c.h.b16 %v686
    %v705 = vunpack.c.l.b16 %v687
    %v706 = vunpack.c.h.b16 %v687
    %v707 = vunpack.c.l.b16 %v688
    %v708 = vunpack.c.h.b16 %v688
    %v709 = vunpack.c.l.b16 %v689
    %v710 = vunpack.c.h.b16 %v689
    %v711 = vunpack.c.l.b16 %v690
    %v712 = vunpack.c.h.b16 %v690
    %v713 = vunpack.c.l.b16 %v691
    %v714 = vunpack.c.h.b16 %v691
    %v715 = vunpack.c.l.b16 %v692
    %v716 = vunpack.c.h.b16 %v692
    %v717 = vpack.c.b16 %v701, %v701
    %v718 = vpack.c.b16 %v702, %v702
    %v719 = vpack.c.b16 %v703, %v703
    %v720 = vpack.c.b16 %v704, %v704
    %v721 = vpack.c.b16 %v705, %v705
    %v722 = vpack.c.b16 %v706, %v706
    %v723 = vpack.c.b16 %v707, %v707
    %v724 = vpack.c.b16 %v708, %v708
    %v725 = vpack.c.b16 %v709, %v709
    %v726 = vpack.c.b16 %v710, %v710
    %v727 = vpack.c.b16 %v711, %v711
    %v728 = vpack.c.b16 %v712, %v712
    %v729 = vpack.c.b16 %v713, %v713
    %v730 = vpack.c.b16 %v714, %v714
    %v731 = vpack.c.b16 %v715, %v715
    %v732 = vpack.c.b16 %v716, %v716
    %749 = vst [vmem:[%s5] sm:$0xf] %v717
    %750 = vst [vmem:[%s5 + $0x4] sm:$0xf] %v718
    %751 = vst [vmem:[%s5 + $0x8] sm:$0xf] %v719
    %752 = vst [vmem:[%s5 + $0xc] sm:$0xf] %v720
    %753 = vst [vmem:[%s5 + $0x10] sm:$0xf] %v721
    %754 = vst [vmem:[%s5 + $0x14] sm:$0xf] %v722
    %755 = vst [vmem:[%s5 + $0x18] sm:$0xf] %v723
    %756 = vst [vmem:[%s5 + $0x1c] sm:$0xf] %v724
    %757 = vst [vmem:[%s5 + $0x20] sm:$0xf] %v725
    %758 = vst [vmem:[%s5 + $0x24] sm:$0xf] %v726
    %759 = vst [vmem:[%s5 + $0x28] sm:$0xf] %v727
    %760 = vst [vmem:[%s5 + $0x2c] sm:$0xf] %v728
    %761 = vst [vmem:[%s5 + $0x30] sm:$0xf] %v729
    %762 = vst [vmem:[%s5 + $0x34] sm:$0xf] %v730
    %763 = vst [vmem:[%s5 + $0x38] sm:$0xf] %v731
    %764 = vst [vmem:[%s5 + $0x3c] sm:$0xf] %v732
  $region29: #{gcn_forward.4} parent=0 // pred_fallthru
    _
  // Predicated region
  $region30: #{gcn_forward.4} parent=0 // pred_check
    _
  $region31: #{gcn_forward.4} parent=0 // pred_check_branch
    %766 = sbr.rel (0) target = $region33
  $region32: #{gcn_forward.4} parent=0 // pred_region
    _
  $region33: #{gcn_forward.4} parent=0 // pred_fallthru
    _
  // Predicated region
  $region34: #{gcn_forward.4} parent=0 // pred_check
    _
  $region35: #{gcn_forward.4} parent=0 // pred_check_branch
    %768 = sbr.rel (0) target = $region37
  $region36: #{gcn_forward.4} parent=0 // pred_region
    _
  $region37: #{gcn_forward.4} parent=0 // pred_fallthru
    _

// kernel: gcn_forward.5
$region0: #{gcn_forward.5}
  #allocation0 [shape = 'u32[]', space=smem, size = 0x4, offset = 0x4, fixed_abs, tag = 'smem constant byte address 0x4 - core index']
  #allocation1 [shape = 'u32[144,128]{1,0:T(1,128)}', space=vmem, size = 0x12000, scoped, tag = 'internal scratch']
  #allocation2 [shape = 'f32[128,128]{1,0:T(8,128)}', space=vmem, size = 0x10000, scoped, tag = 'scratch operand']
  %s0 = inlined_call_operand.vmem [shape: s8[128,128], index: 0, kind: input, shape index: {}]
  %s1 = inlined_call_operand.vmem [shape: bf16[128,128], index: 1, kind: input, shape index: {}]
  %s2 = inlined_call_operand.vmem [shape: f32[128,1], index: 2, kind: input, shape index: {}]
  %s3 = inlined_call_operand.vmem [shape: f32[1,128], index: 3, kind: input, shape index: {}]
  %s4 = inlined_call_operand.vmem [shape: f32[128,128], index: 4, kind: output, shape index: {}]
  %s5 = sld [smem:[#allocation0]]
  $region34: #{gcn_forward.5} parent=0
    _
  %s7 = ssub.s32 1, %s5
  %s8 = scalar_select 0, %s7, %s5
  // Predicated region
  $region2: #{gcn_forward.5} parent=0 // pred_check
    _
  $region3: #{gcn_forward.5} parent=0 // pred_check_branch
    %10 = sbr.rel (0) target = $region5
  $region4: #{gcn_forward.5} parent=0 // pred_region
    _
  $region5: #{gcn_forward.5} parent=0 // pred_fallthru
    _
  // Predicated region
  $region6: #{gcn_forward.5} parent=0 // pred_check
    _
  $region7: #{gcn_forward.5} parent=0 // pred_check_branch
    %12 = sbr.rel (0) target = $region9
  $region8: #{gcn_forward.5} parent=0 // pred_region
    _
  $region9: #{gcn_forward.5} parent=0 // pred_fallthru
    _
  // Predicated region
  $region10: #{gcn_forward.5} parent=0 // pred_check
    _
  $region11: #{gcn_forward.5} parent=0 // pred_check_branch
    %14 = sbr.rel (0) target = $region13
  $region12: #{gcn_forward.5} parent=0 // pred_region
    _
  $region13: #{gcn_forward.5} parent=0 // pred_fallthru
    _
  // Predicated region
  $region14: #{gcn_forward.5} parent=0 // pred_check
    _
  $region15: #{gcn_forward.5} parent=0 // pred_check_branch
    %16 = sbr.rel (0) target = $region17
  $region16: #{gcn_forward.5} parent=0 // pred_region
    _
  $region17: #{gcn_forward.5} parent=0 // pred_fallthru
    _
  %p18 = scmp.eq.s32.totalorder 0, 0
  // Predicated region
  $region18: #{gcn_forward.5} parent=0 // pred_check
    %p19 = pneg %p18
  $region19: #{gcn_forward.5} parent=0 // pred_check_branch
    %21 = sbr.rel (%p19) target = $region21
  $region20: #{gcn_forward.5} parent=0 // pred_region
    %22 = vst [vmem:[#allocation2] sm:$0xff] 0.0
    %23 = vst [vmem:[#allocation2 + $0x8] sm:$0xff] 0.0
    %24 = vst [vmem:[#allocation2 + $0x10] sm:$0xff] 0.0
    %25 = vst [vmem:[#allocation2 + $0x18] sm:$0xff] 0.0
    %26 = vst [vmem:[#allocation2 + $0x20] sm:$0xff] 0.0
    %27 = vst [vmem:[#allocation2 + $0x28] sm:$0xff] 0.0
    %28 = vst [vmem:[#allocation2 + $0x30] sm:$0xff] 0.0
    %29 = vst [vmem:[#allocation2 + $0x38] sm:$0xff] 0.0
    %30 = vst [vmem:[#allocation2 + $0x40] sm:$0xff] 0.0
    %31 = vst [vmem:[#allocation2 + $0x48] sm:$0xff] 0.0
    %32 = vst [vmem:[#allocation2 + $0x50] sm:$0xff] 0.0
    %33 = vst [vmem:[#allocation2 + $0x58] sm:$0xff] 0.0
    %34 = vst [vmem:[#allocation2 + $0x60] sm:$0xff] 0.0
    %35 = vst [vmem:[#allocation2 + $0x68] sm:$0xff] 0.0
    %36 = vst [vmem:[#allocation2 + $0x70] sm:$0xff] 0.0
    %37 = vst [vmem:[#allocation2 + $0x78] sm:$0xff] 0.0
  $region21: #{gcn_forward.5} parent=0 // pred_fallthru
    _
  %v38 = vld [vmem:[#allocation2] sm:$0xff]
  %v39 = vld [vmem:[#allocation2 + $0x8] sm:$0xff]
  %v40 = vld [vmem:[#allocation2 + $0x10] sm:$0xff]
  %v41 = vld [vmem:[#allocation2 + $0x18] sm:$0xff]
  %v42 = vld [vmem:[#allocation2 + $0x20] sm:$0xff]
  %v43 = vld [vmem:[#allocation2 + $0x28] sm:$0xff]
  %v44 = vld [vmem:[#allocation2 + $0x30] sm:$0xff]
  %v45 = vld [vmem:[#allocation2 + $0x38] sm:$0xff]
  %v46 = vld [vmem:[#allocation2 + $0x40] sm:$0xff]
  %v47 = vld [vmem:[#allocation2 + $0x48] sm:$0xff]
  %v48 = vld [vmem:[#allocation2 + $0x50] sm:$0xff]
  %v49 = vld [vmem:[#allocation2 + $0x58] sm:$0xff]
  %v50 = vld [vmem:[#allocation2 + $0x60] sm:$0xff]
  %v51 = vld [vmem:[#allocation2 + $0x68] sm:$0xff]
  %v52 = vld [vmem:[#allocation2 + $0x70] sm:$0xff]
  %v53 = vld [vmem:[#allocation2 + $0x78] sm:$0xff]
  %v54 = vld [vmem:[%s0] sm:$0x3]
  %v55 = vld [vmem:[%s0 + $0x2] sm:$0x3]
  %v56 = vld [vmem:[%s0 + $0x4] sm:$0x3]
  %v57 = vld [vmem:[%s0 + $0x6] sm:$0x3]
  %v58 = vld [vmem:[%s0 + $0x8] sm:$0x3]
  %v59 = vld [vmem:[%s0 + $0xa] sm:$0x3]
  %v60 = vld [vmem:[%s0 + $0xc] sm:$0x3]
  %v61 = vld [vmem:[%s0 + $0xe] sm:$0x3]
  %v62 = vld [vmem:[%s0 + $0x10] sm:$0x3]
  %v63 = vld [vmem:[%s0 + $0x12] sm:$0x3]
  %v64 = vld [vmem:[%s0 + $0x14] sm:$0x3]
  %v65 = vld [vmem:[%s0 + $0x16] sm:$0x3]
  %v66 = vld [vmem:[%s0 + $0x18] sm:$0x3]
  %v67 = vld [vmem:[%s0 + $0x1a] sm:$0x3]
  %v68 = vld [vmem:[%s0 + $0x1c] sm:$0x3]
  %v69 = vld [vmem:[%s0 + $0x1e] sm:$0x3]
  %v70 = vunpack.c.l.s8.bf16 %v54
  %v71 = vunpack.c.l.s8.bf16 %v55
  %v72 = vunpack.c.l.s8.bf16 %v56
  %v73 = vunpack.c.l.s8.bf16 %v57
  %v74 = vunpack.c.l.s8.bf16 %v58
  %v75 = vunpack.c.l.s8.bf16 %v59
  %v76 = vunpack.c.l.s8.bf16 %v60
  %v77 = vunpack.c.l.s8.bf16 %v61
  %v78 = vunpack.c.l.s8.bf16 %v62
  %v79 = vunpack.c.l.s8.bf16 %v63
  %v80 = vunpack.c.l.s8.bf16 %v64
  %v81 = vunpack.c.l.s8.bf16 %v65
  %v82 = vunpack.c.l.s8.bf16 %v66
  %v83 = vunpack.c.l.s8.bf16 %v67
  %v84 = vunpack.c.l.s8.bf16 %v68
  %v85 = vunpack.c.l.s8.bf16 %v69
  %v86 = vld [vmem:[%s1] sm:$0xf]
  %v87 = vld [vmem:[%s1 + $0x4] sm:$0xf]
  %v88 = vld [vmem:[%s1 + $0x8] sm:$0xf]
  %v89 = vld [vmem:[%s1 + $0xc] sm:$0xf]
  %v90 = vld [vmem:[%s1 + $0x10] sm:$0xf]
  %v91 = vld [vmem:[%s1 + $0x14] sm:$0xf]
  %v92 = vld [vmem:[%s1 + $0x18] sm:$0xf]
  %v93 = vld [vmem:[%s1 + $0x1c] sm:$0xf]
  %v94 = vld [vmem:[%s1 + $0x20] sm:$0xf]
  %v95 = vld [vmem:[%s1 + $0x24] sm:$0xf]
  %v96 = vld [vmem:[%s1 + $0x28] sm:$0xf]
  %v97 = vld [vmem:[%s1 + $0x2c] sm:$0xf]
  %v98 = vld [vmem:[%s1 + $0x30] sm:$0xf]
  %v99 = vld [vmem:[%s1 + $0x34] sm:$0xf]
  %v100 = vld [vmem:[%s1 + $0x38] sm:$0xf]
  %v101 = vld [vmem:[%s1 + $0x3c] sm:$0xf]
  %v118 = vunpack.c.l.b16 %v70
  %v119 = vunpack.c.l.b16 %v71
  %v120 = vunpack.c.l.b16 %v72
  %v121 = vunpack.c.l.b16 %v73
  %v122 = vunpack.c.l.b16 %v74
  %v123 = vunpack.c.l.b16 %v75
  %v124 = vunpack.c.l.b16 %v76
  %v125 = vunpack.c.l.b16 %v77
  %v126 = vunpack.c.l.b16 %v78
  %v127 = vunpack.c.l.b16 %v79
  %v128 = vunpack.c.l.b16 %v80
  %v129 = vunpack.c.l.b16 %v81
  %v130 = vunpack.c.l.b16 %v82
  %v131 = vunpack.c.l.b16 %v83
  %v132 = vunpack.c.l.b16 %v84
  %v133 = vunpack.c.l.b16 %v85
  %v134 = vpack.c.b16 %v119, %v118
  %v135 = vpack.c.b16 %v121, %v120
  %v136 = vpack.c.b16 %v123, %v122
  %v137 = vpack.c.b16 %v125, %v124
  %v138 = vpack.c.b16 %v127, %v126
  %v139 = vpack.c.b16 %v129, %v128
  %v140 = vpack.c.b16 %v131, %v130
  %v141 = vpack.c.b16 %v133, %v132
  %v166 = vunpack.c.l.b16 %v86
  %v167 = vunpack.c.l.b16 %v87
  %v168 = vunpack.c.l.b16 %v88
  %v169 = vunpack.c.l.b16 %v89
  %v170 = vunpack.c.l.b16 %v90
  %v171 = vunpack.c.l.b16 %v91
  %v172 = vunpack.c.l.b16 %v92
  %v173 = vunpack.c.l.b16 %v93
  %v174 = vunpack.c.l.b16 %v94
  %v175 = vunpack.c.l.b16 %v95
  %v176 = vunpack.c.l.b16 %v96
  %v177 = vunpack.c.l.b16 %v97
  %v178 = vunpack.c.l.b16 %v98
  %v179 = vunpack.c.l.b16 %v99
  %v180 = vunpack.c.l.b16 %v100
  %v181 = vunpack.c.l.b16 %v101
  %v182 = vpack.c.b16 %v167, %v166
  %v183 = vpack.c.b16 %v169, %v168
  %v184 = vpack.c.b16 %v171, %v170
  %v185 = vpack.c.b16 %v173, %v172
  %v186 = vpack.c.b16 %v175, %v174
  %v187 = vpack.c.b16 %v177, %v176
  %v188 = vpack.c.b16 %v179, %v178
  %v189 = vpack.c.b16 %v181, %v180
  %198 = vmatprep.subr.bf16.mxu0 0
  %199 = vmatpush1.bf16.msra.mxu0 %v189
  %200 = vmatprep.subr.bf16.mxu0 0
  %201 = vmatpush1.bf16.msra.mxu0 %v188
  %202 = vmatprep.subr.bf16.mxu0 0
  %203 = vmatpush1.bf16.msra.mxu0 %v187
  %204 = vmatprep.subr.bf16.mxu0 0
  %205 = vmatpush1.bf16.msra.mxu0 %v186
  %206 = vmatprep.subr.bf16.mxu0 0
  %207 = vmatpush1.bf16.msra.mxu0 %v185
  %208 = vmatprep.subr.bf16.mxu0 0
  %209 = vmatpush1.bf16.msra.mxu0 %v184
  %210 = vmatprep.subr.bf16.mxu0 0
  %211 = vmatpush1.bf16.msra.mxu0 %v183
  %212 = vmatprep.subr.bf16.mxu0 0
  %213 = vmatpush1.bf16.msra.mxu0 %v182
  %214 = vmatprep.subr.bf16.mxu0 0
  %215 = vmatpush2.bf16.msra.mxu0 0
  %216 = vmatprep.subr.bf16.mxu0 0
  %217 = vmatpush2.bf16.msra.mxu0 0
  %218 = vmatprep.subr.bf16.mxu0 0
  %219 = vmatpush2.bf16.msra.mxu0 0
  %220 = vmatprep.subr.bf16.mxu0 0
  %221 = vmatpush2.bf16.msra.mxu0 0
  %222 = vmatprep.subr.bf16.mxu0 0
  %223 = vmatpush2.bf16.msra.mxu0 0
  %224 = vmatprep.subr.bf16.mxu0 0
  %225 = vmatpush2.bf16.msra.mxu0 0
  %226 = vmatprep.subr.bf16.mxu0 0
  %227 = vmatpush2.bf16.msra.mxu0 0
  %228 = vmatprep.subr.bf16.mxu0 0
  %229 = vmatpush2.bf16.msra.mxu0 0
  %230 = vmatprep.mubr.bf16.mxu0 0
  %231 = vmatmul.mubr.bf16.gmra.mxu0 %v134
  %v232 = vpop.f32.mrf.mxu0
  %v233 = vadd.f32 0.0, %v232
  %v234 = vpop.f32.mrf.mxu0
  %v235 = vpop.f32.mrf.mxu0
  %v236 = vadd.f32 0.0, %v235
  %v237 = vpop.f32.mrf.mxu0
  %238 = vmatprep.mubr.bf16.mxu0 0
  %239 = vmatmul.mubr.bf16.gmra.mxu0 %v135
  %v240 = vpop.f32.mrf.mxu0
  %v241 = vadd.f32 0.0, %v240
  %v242 = vpop.f32.mrf.mxu0
  %v243 = vpop.f32.mrf.mxu0
  %v244 = vadd.f32 0.0, %v243
  %v245 = vpop.f32.mrf.mxu0
  %246 = vmatprep.mubr.bf16.mxu0 0
  %247 = vmatmul.mubr.bf16.gmra.mxu0 %v136
  %v248 = vpop.f32.mrf.mxu0
  %v249 = vadd.f32 0.0, %v248
  %v250 = vpop.f32.mrf.mxu0
  %v251 = vpop.f32.mrf.mxu0
  %v252 = vadd.f32 0.0, %v251
  %v253 = vpop.f32.mrf.mxu0
  %254 = vmatprep.mubr.bf16.mxu0 0
  %255 = vmatmul.mubr.bf16.gmra.mxu0 %v137
  %v256 = vpop.f32.mrf.mxu0
  %v257 = vadd.f32 0.0, %v256
  %v258 = vpop.f32.mrf.mxu0
  %v259 = vpop.f32.mrf.mxu0
  %v260 = vadd.f32 0.0, %v259
  %v261 = vpop.f32.mrf.mxu0
  %262 = vmatprep.mubr.bf16.mxu0 0
  %263 = vmatmul.mubr.bf16.gmra.mxu0 %v138
  %v264 = vpop.f32.mrf.mxu0
  %v265 = vadd.f32 0.0, %v264
  %v266 = vpop.f32.mrf.mxu0
  %v267 = vpop.f32.mrf.mxu0
  %v268 = vadd.f32 0.0, %v267
  %v269 = vpop.f32.mrf.mxu0
  %270 = vmatprep.mubr.bf16.mxu0 0
  %271 = vmatmul.mubr.bf16.gmra.mxu0 %v139
  %v272 = vpop.f32.mrf.mxu0
  %v273 = vadd.f32 0.0, %v272
  %v274 = vpop.f32.mrf.mxu0
  %v275 = vpop.f32.mrf.mxu0
  %v276 = vadd.f32 0.0, %v275
  %v277 = vpop.f32.mrf.mxu0
  %278 = vmatprep.mubr.bf16.mxu0 0
  %279 = vmatmul.mubr.bf16.gmra.mxu0 %v140
  %v280 = vpop.f32.mrf.mxu0
  %v281 = vadd.f32 0.0, %v280
  %v282 = vpop.f32.mrf.mxu0
  %v283 = vpop.f32.mrf.mxu0
  %v284 = vadd.f32 0.0, %v283
  %v285 = vpop.f32.mrf.mxu0
  %286 = vmatprep.mubr.bf16.mxu0 0
  %287 = vmatmul.mubr.bf16.gmra.mxu0 %v141
  %v288 = vpop.f32.mrf.mxu0
  %v289 = vadd.f32 0.0, %v288
  %v290 = vpop.f32.mrf.mxu0
  %v291 = vpop.f32.mrf.mxu0
  %v292 = vadd.f32 0.0, %v291
  %v293 = vpop.f32.mrf.mxu0
  %294 = vdwg.mxu0
  %v295 = vadd.f32 %v38, %v233
  %v296 = vadd.f32 %v39, %v236
  %v297 = vadd.f32 %v40, %v241
  %v298 = vadd.f32 %v41, %v244
  %v299 = vadd.f32 %v42, %v249
  %v300 = vadd.f32 %v43, %v252
  %v301 = vadd.f32 %v44, %v257
  %v302 = vadd.f32 %v45, %v260
  %v303 = vadd.f32 %v46, %v265
  %v304 = vadd.f32 %v47, %v268
  %v305 = vadd.f32 %v48, %v273
  %v306 = vadd.f32 %v49, %v276
  %v307 = vadd.f32 %v50, %v281
  %v308 = vadd.f32 %v51, %v284
  %v309 = vadd.f32 %v52, %v289
  %v310 = vadd.f32 %v53, %v292
  %311 = vst [vmem:[#allocation2] sm:$0xff] %v295
  %312 = vst [vmem:[#allocation2 + $0x8] sm:$0xff] %v296
  %313 = vst [vmem:[#allocation2 + $0x10] sm:$0xff] %v297
  %314 = vst [vmem:[#allocation2 + $0x18] sm:$0xff] %v298
  %315 = vst [vmem:[#allocation2 + $0x20] sm:$0xff] %v299
  %316 = vst [vmem:[#allocation2 + $0x28] sm:$0xff] %v300
  %317 = vst [vmem:[#allocation2 + $0x30] sm:$0xff] %v301
  %318 = vst [vmem:[#allocation2 + $0x38] sm:$0xff] %v302
  %319 = vst [vmem:[#allocation2 + $0x40] sm:$0xff] %v303
  %320 = vst [vmem:[#allocation2 + $0x48] sm:$0xff] %v304
  %321 = vst [vmem:[#allocation2 + $0x50] sm:$0xff] %v305
  %322 = vst [vmem:[#allocation2 + $0x58] sm:$0xff] %v306
  %323 = vst [vmem:[#allocation2 + $0x60] sm:$0xff] %v307
  %324 = vst [vmem:[#allocation2 + $0x68] sm:$0xff] %v308
  %325 = vst [vmem:[#allocation2 + $0x70] sm:$0xff] %v309
  %326 = vst [vmem:[#allocation2 + $0x78] sm:$0xff] %v310
  // Predicated region
  $region22: #{gcn_forward.5} parent=0 // pred_check
    %p327 = pneg %p18
  $region23: #{gcn_forward.5} parent=0 // pred_check_branch
    %329 = sbr.rel (%p327) target = $region25
  $region24: #{gcn_forward.5} parent=0 // pred_region
    %v330 = vld [vmem:[#allocation2] sm:$0xff]
    %v331 = vld [vmem:[#allocation2 + $0x8] sm:$0xff]
    %v332 = vld [vmem:[#allocation2 + $0x10] sm:$0xff]
    %v333 = vld [vmem:[#allocation2 + $0x18] sm:$0xff]
    %v334 = vld [vmem:[#allocation2 + $0x20] sm:$0xff]
    %v335 = vld [vmem:[#allocation2 + $0x28] sm:$0xff]
    %v336 = vld [vmem:[#allocation2 + $0x30] sm:$0xff]
    %v337 = vld [vmem:[#allocation2 + $0x38] sm:$0xff]
    %v338 = vld [vmem:[#allocation2 + $0x40] sm:$0xff]
    %v339 = vld [vmem:[#allocation2 + $0x48] sm:$0xff]
    %v340 = vld [vmem:[#allocation2 + $0x50] sm:$0xff]
    %v341 = vld [vmem:[#allocation2 + $0x58] sm:$0xff]
    %v342 = vld [vmem:[#allocation2 + $0x60] sm:$0xff]
    %v343 = vld [vmem:[#allocation2 + $0x68] sm:$0xff]
    %v344 = vld [vmem:[#allocation2 + $0x70] sm:$0xff]
    %v345 = vld [vmem:[#allocation2 + $0x78] sm:$0xff]
    %v346 = vld [vmem:[%s2] sm:$0xff]
    %v347 = vld [vmem:[%s2 + $0x8] sm:$0xff]
    %v348 = vld [vmem:[%s2 + $0x10] sm:$0xff]
    %v349 = vld [vmem:[%s2 + $0x18] sm:$0xff]
    %v350 = vld [vmem:[%s2 + $0x20] sm:$0xff]
    %v351 = vld [vmem:[%s2 + $0x28] sm:$0xff]
    %v352 = vld [vmem:[%s2 + $0x30] sm:$0xff]
    %v353 = vld [vmem:[%s2 + $0x38] sm:$0xff]
    %v354 = vld [vmem:[%s2 + $0x40] sm:$0xff]
    %v355 = vld [vmem:[%s2 + $0x48] sm:$0xff]
    %v356 = vld [vmem:[%s2 + $0x50] sm:$0xff]
    %v357 = vld [vmem:[%s2 + $0x58] sm:$0xff]
    %v358 = vld [vmem:[%s2 + $0x60] sm:$0xff]
    %v359 = vld [vmem:[%s2 + $0x68] sm:$0xff]
    %v360 = vld [vmem:[%s2 + $0x70] sm:$0xff]
    %v361 = vld [vmem:[%s2 + $0x78] sm:$0xff]
    %363 = vset.pattern.permute.xlu0 0
    %364 = vperm.xlu0 %363, %v346
    %v365 = vpop.permute.xlu0 %364
    %368 = vset.pattern.permute.xlu0 0
    %369 = vperm.xlu0 %368, %v347
    %v370 = vpop.permute.xlu0 %369
    %373 = vset.pattern.permute.xlu0 0
    %374 = vperm.xlu0 %373, %v348
    %v375 = vpop.permute.xlu0 %374
    %378 = vset.pattern.permute.xlu0 0
    %379 = vperm.xlu0 %378, %v349
    %v380 = vpop.permute.xlu0 %379
    %383 = vset.pattern.permute.xlu0 0
    %384 = vperm.xlu0 %383, %v350
    %v385 = vpop.permute.xlu0 %384
    %388 = vset.pattern.permute.xlu0 0
    %389 = vperm.xlu0 %388, %v351
    %v390 = vpop.permute.xlu0 %389
    %393 = vset.pattern.permute.xlu0 0
    %394 = vperm.xlu0 %393, %v352
    %v395 = vpop.permute.xlu0 %394
    %398 = vset.pattern.permute.xlu0 0
    %399 = vperm.xlu0 %398, %v353
    %v400 = vpop.permute.xlu0 %399
    %403 = vset.pattern.permute.xlu0 0
    %404 = vperm.xlu0 %403, %v354
    %v405 = vpop.permute.xlu0 %404
    %408 = vset.pattern.permute.xlu0 0
    %409 = vperm.xlu0 %408, %v355
    %v410 = vpop.permute.xlu0 %409
    %413 = vset.pattern.permute.xlu0 0
    %414 = vperm.xlu0 %413, %v356
    %v415 = vpop.permute.xlu0 %414
    %418 = vset.pattern.permute.xlu0 0
    %419 = vperm.xlu0 %418, %v357
    %v420 = vpop.permute.xlu0 %419
    %423 = vset.pattern.permute.xlu0 0
    %424 = vperm.xlu0 %423, %v358
    %v425 = vpop.permute.xlu0 %424
    %428 = vset.pattern.permute.xlu0 0
    %429 = vperm.xlu0 %428, %v359
    %v430 = vpop.permute.xlu0 %429
    %433 = vset.pattern.permute.xlu0 0
    %434 = vperm.xlu0 %433, %v360
    %v435 = vpop.permute.xlu0 %434
    %438 = vset.pattern.permute.xlu0 0
    %439 = vperm.xlu0 %438, %v361
    %v440 = vpop.permute.xlu0 %439
    %v442 = vmul.f32 %v330, %v365
    %v443 = vmul.f32 %v331, %v370
    %v444 = vmul.f32 %v332, %v375
    %v445 = vmul.f32 %v333, %v380
    %v446 = vmul.f32 %v334, %v385
    %v447 = vmul.f32 %v335, %v390
    %v448 = vmul.f32 %v336, %v395
    %v449 = vmul.f32 %v337, %v400
    %v450 = vmul.f32 %v338, %v405
    %v451 = vmul.f32 %v339, %v410
    %v452 = vmul.f32 %v340, %v415
    %v453 = vmul.f32 %v341, %v420
    %v454 = vmul.f32 %v342, %v425
    %v455 = vmul.f32 %v343, %v430
    %v456 = vmul.f32 %v344, %v435
    %v457 = vmul.f32 %v345, %v440
    %v458 = vld [vmem:[%s3] sm:$0x1]
    %v460 = vlaneseq
    %v461 = vshrl.u32 %v460, 7
    %v462 = vsub.s32 0, %v461
    %v463 = vrot.slane %v458, %v462
    %v465 = vadd.f32 %v442, %v463
    %v466 = vadd.f32 %v443, %v463
    %v467 = vadd.f32 %v444, %v463
    %v468 = vadd.f32 %v445, %v463
    %v469 = vadd.f32 %v446, %v463
    %v470 = vadd.f32 %v447, %v463
    %v471 = vadd.f32 %v448, %v463
    %v472 = vadd.f32 %v449, %v463
    %v473 = vadd.f32 %v450, %v463
    %v474 = vadd.f32 %v451, %v463
    %v475 = vadd.f32 %v452, %v463
    %v476 = vadd.f32 %v453, %v463
    %v477 = vadd.f32 %v454, %v463
    %v478 = vadd.f32 %v455, %v463
    %v479 = vadd.f32 %v456, %v463
    %v480 = vadd.f32 %v457, %v463
    %v481 = vlaneseq
    %v482 = vand.u32 %v481, 127
    %vm483 = vcmp.lt.s32.totalorder %v482, 8
    %v484 = vsel %vm483, %v465, -1e+30
    %v485 = vsel %vm483, %v466, -1e+30
    %v486 = vsel %vm483, %v467, -1e+30
    %v487 = vsel %vm483, %v468, -1e+30
    %v488 = vsel %vm483, %v469, -1e+30
    %v489 = vsel %vm483, %v470, -1e+30
    %v490 = vsel %vm483, %v471, -1e+30
    %v491 = vsel %vm483, %v472, -1e+30
    %v492 = vsel %vm483, %v473, -1e+30
    %v493 = vsel %vm483, %v474, -1e+30
    %v494 = vsel %vm483, %v475, -1e+30
    %v495 = vsel %vm483, %v476, -1e+30
    %v496 = vsel %vm483, %v477, -1e+30
    %v497 = vsel %vm483, %v478, -1e+30
    %v498 = vsel %vm483, %v479, -1e+30
    %v499 = vsel %vm483, %v480, -1e+30
    %500 = vmax.xlane.f32.xlu0 %v484
    %v501 = vpop.xlane.xlu0 %500
    %502 = vmax.xlane.f32.xlu0 %v485
    %v503 = vpop.xlane.xlu0 %502
    %504 = vmax.xlane.f32.xlu0 %v486
    %v505 = vpop.xlane.xlu0 %504
    %506 = vmax.xlane.f32.xlu0 %v487
    %v507 = vpop.xlane.xlu0 %506
    %508 = vmax.xlane.f32.xlu0 %v488
    %v509 = vpop.xlane.xlu0 %508
    %510 = vmax.xlane.f32.xlu0 %v489
    %v511 = vpop.xlane.xlu0 %510
    %512 = vmax.xlane.f32.xlu0 %v490
    %v513 = vpop.xlane.xlu0 %512
    %514 = vmax.xlane.f32.xlu0 %v491
    %v515 = vpop.xlane.xlu0 %514
    %516 = vmax.xlane.f32.xlu0 %v492
    %v517 = vpop.xlane.xlu0 %516
    %518 = vmax.xlane.f32.xlu0 %v493
    %v519 = vpop.xlane.xlu0 %518
    %520 = vmax.xlane.f32.xlu0 %v494
    %v521 = vpop.xlane.xlu0 %520
    %522 = vmax.xlane.f32.xlu0 %v495
    %v523 = vpop.xlane.xlu0 %522
    %524 = vmax.xlane.f32.xlu0 %v496
    %v525 = vpop.xlane.xlu0 %524
    %526 = vmax.xlane.f32.xlu0 %v497
    %v527 = vpop.xlane.xlu0 %526
    %528 = vmax.xlane.f32.xlu0 %v498
    %v529 = vpop.xlane.xlu0 %528
    %530 = vmax.xlane.f32.xlu0 %v499
    %v531 = vpop.xlane.xlu0 %530
    %v532 = vsub.f32 %v484, %v501
    %v533 = vsub.f32 %v485, %v503
    %v534 = vsub.f32 %v486, %v505
    %v535 = vsub.f32 %v487, %v507
    %v536 = vsub.f32 %v488, %v509
    %v537 = vsub.f32 %v489, %v511
    %v538 = vsub.f32 %v490, %v513
    %v539 = vsub.f32 %v491, %v515
    %v540 = vsub.f32 %v492, %v517
    %v541 = vsub.f32 %v493, %v519
    %v542 = vsub.f32 %v494, %v521
    %v543 = vsub.f32 %v495, %v523
    %v544 = vsub.f32 %v496, %v525
    %v545 = vsub.f32 %v497, %v527
    %v546 = vsub.f32 %v498, %v529
    %v547 = vsub.f32 %v499, %v531
    %v548 = vmul.f32 %v532, 1.442695
    %v549 = vpow.pop %v548
    %v550 = vmul.f32 %v533, 1.442695
    %v551 = vpow.pop %v550
    %v552 = vmul.f32 %v534, 1.442695
    %v553 = vpow.pop %v552
    %v554 = vmul.f32 %v535, 1.442695
    %v555 = vpow.pop %v554
    %v556 = vmul.f32 %v536, 1.442695
    %v557 = vpow.pop %v556
    %v558 = vmul.f32 %v537, 1.442695
    %v559 = vpow.pop %v558
    %v560 = vmul.f32 %v538, 1.442695
    %v561 = vpow.pop %v560
    %v562 = vmul.f32 %v539, 1.442695
    %v563 = vpow.pop %v562
    %v564 = vmul.f32 %v540, 1.442695
    %v565 = vpow.pop %v564
    %v566 = vmul.f32 %v541, 1.442695
    %v567 = vpow.pop %v566
    %v568 = vmul.f32 %v542, 1.442695
    %v569 = vpow.pop %v568
    %v570 = vmul.f32 %v543, 1.442695
    %v571 = vpow.pop %v570
    %v572 = vmul.f32 %v544, 1.442695
    %v573 = vpow.pop %v572
    %v574 = vmul.f32 %v545, 1.442695
    %v575 = vpow.pop %v574
    %v576 = vmul.f32 %v546, 1.442695
    %v577 = vpow.pop %v576
    %v578 = vmul.f32 %v547, 1.442695
    %v579 = vpow.pop %v578
    %580 = vadd.xlane.f32.xlu0 %v549
    %v581 = vpop.xlane.xlu0 %580
    %582 = vadd.xlane.f32.xlu0 %v551
    %v583 = vpop.xlane.xlu0 %582
    %584 = vadd.xlane.f32.xlu0 %v553
    %v585 = vpop.xlane.xlu0 %584
    %586 = vadd.xlane.f32.xlu0 %v555
    %v587 = vpop.xlane.xlu0 %586
    %588 = vadd.xlane.f32.xlu0 %v557
    %v589 = vpop.xlane.xlu0 %588
    %590 = vadd.xlane.f32.xlu0 %v559
    %v591 = vpop.xlane.xlu0 %590
    %592 = vadd.xlane.f32.xlu0 %v561
    %v593 = vpop.xlane.xlu0 %592
    %594 = vadd.xlane.f32.xlu0 %v563
    %v595 = vpop.xlane.xlu0 %594
    %596 = vadd.xlane.f32.xlu0 %v565
    %v597 = vpop.xlane.xlu0 %596
    %598 = vadd.xlane.f32.xlu0 %v567
    %v599 = vpop.xlane.xlu0 %598
    %600 = vadd.xlane.f32.xlu0 %v569
    %v601 = vpop.xlane.xlu0 %600
    %602 = vadd.xlane.f32.xlu0 %v571
    %v603 = vpop.xlane.xlu0 %602
    %604 = vadd.xlane.f32.xlu0 %v573
    %v605 = vpop.xlane.xlu0 %604
    %606 = vadd.xlane.f32.xlu0 %v575
    %v607 = vpop.xlane.xlu0 %606
    %608 = vadd.xlane.f32.xlu0 %v577
    %v609 = vpop.xlane.xlu0 %608
    %610 = vadd.xlane.f32.xlu0 %v579
    %v611 = vpop.xlane.xlu0 %610
    %v612 = vlog2.pop %v581
    %v613 = vmul.f32 %v612, 0.6931472
    %v614 = vlog2.pop %v583
    %v615 = vmul.f32 %v614, 0.6931472
    %v616 = vlog2.pop %v585
    %v617 = vmul.f32 %v616, 0.6931472
    %v618 = vlog2.pop %v587
    %v619 = vmul.f32 %v618, 0.6931472
    %v620 = vlog2.pop %v589
    %v621 = vmul.f32 %v620, 0.6931472
    %v622 = vlog2.pop %v591
    %v623 = vmul.f32 %v622, 0.6931472
    %v624 = vlog2.pop %v593
    %v625 = vmul.f32 %v624, 0.6931472
    %v626 = vlog2.pop %v595
    %v627 = vmul.f32 %v626, 0.6931472
    %v628 = vlog2.pop %v597
    %v629 = vmul.f32 %v628, 0.6931472
    %v630 = vlog2.pop %v599
    %v631 = vmul.f32 %v630, 0.6931472
    %v632 = vlog2.pop %v601
    %v633 = vmul.f32 %v632, 0.6931472
    %v634 = vlog2.pop %v603
    %v635 = vmul.f32 %v634, 0.6931472
    %v636 = vlog2.pop %v605
    %v637 = vmul.f32 %v636, 0.6931472
    %v638 = vlog2.pop %v607
    %v639 = vmul.f32 %v638, 0.6931472
    %v640 = vlog2.pop %v609
    %v641 = vmul.f32 %v640, 0.6931472
    %v642 = vlog2.pop %v611
    %v643 = vmul.f32 %v642, 0.6931472
    %v644 = vsub.f32 %v532, %v613
    %v645 = vsub.f32 %v533, %v615
    %v646 = vsub.f32 %v534, %v617
    %v647 = vsub.f32 %v535, %v619
    %v648 = vsub.f32 %v536, %v621
    %v649 = vsub.f32 %v537, %v623
    %v650 = vsub.f32 %v538, %v625
    %v651 = vsub.f32 %v539, %v627
    %v652 = vsub.f32 %v540, %v629
    %v653 = vsub.f32 %v541, %v631
    %v654 = vsub.f32 %v542, %v633
    %v655 = vsub.f32 %v543, %v635
    %v656 = vsub.f32 %v544, %v637
    %v657 = vsub.f32 %v545, %v639
    %v658 = vsub.f32 %v546, %v641
    %v659 = vsub.f32 %v547, %v643
    %660 = vst [vmem:[%s4] sm:$0xff] %v644
    %661 = vst [vmem:[%s4 + $0x8] sm:$0xff] %v645
    %662 = vst [vmem:[%s4 + $0x10] sm:$0xff] %v646
    %663 = vst [vmem:[%s4 + $0x18] sm:$0xff] %v647
    %664 = vst [vmem:[%s4 + $0x20] sm:$0xff] %v648
    %665 = vst [vmem:[%s4 + $0x28] sm:$0xff] %v649
    %666 = vst [vmem:[%s4 + $0x30] sm:$0xff] %v650
    %667 = vst [vmem:[%s4 + $0x38] sm:$0xff] %v651
    %668 = vst [vmem:[%s4 + $0x40] sm:$0xff] %v652
    %669 = vst [vmem:[%s4 + $0x48] sm:$0xff] %v653
    %670 = vst [vmem:[%s4 + $0x50] sm:$0xff] %v654
    %671 = vst [vmem:[%s4 + $0x58] sm:$0xff] %v655
    %672 = vst [vmem:[%s4 + $0x60] sm:$0xff] %v656
    %673 = vst [vmem:[%s4 + $0x68] sm:$0xff] %v657
    %674 = vst [vmem:[%s4 + $0x70] sm:$0xff] %v658
    %675 = vst [vmem:[%s4 + $0x78] sm:$0xff] %v659
  $region25: #{gcn_forward.5} parent=0 // pred_fallthru
    _
  // Predicated region
  $region26: #{gcn_forward.5} parent=0 // pred_check
    _
  $region27: #{gcn_forward.5} parent=0 // pred_check_branch
    %677 = sbr.rel (0) target = $region29
  $region28: #{gcn_forward.5} parent=0 // pred_region
    _
  $region29: #{gcn_forward.5} parent=0 // pred_fallthru
    _
  // Predicated region
  $region30: #{gcn_forward.5} parent=0 // pred_check
    _
  $region31: #{gcn_forward.5} parent=0 // pred_check_branch
    %679 = sbr.rel (0) target = $region33
  $region32: #{gcn_forward.5} parent=0 // pred_region
    _
  $region33: #{gcn_forward.5} parent=0 // pred_fallthru
    _

</llo_original>
